<compile_context>
chip_gen: v7x
topology: tpu7x:2x2x1
jax: 0.10.0
libtpu: 0.0.40
codegen_flags: <defaults>
</compile_context>

<pallas_src>
import jax
import jax.numpy as jnp
import numpy as np
from jax.experimental import pallas as pl
from jax.experimental.pallas import tpu as pltpu

HIGHEST = jax.lax.Precision.HIGHEST


def graphsage_kernel(a_ref, ared_ref, h_ref, w1s_ref, w1n_ref, b1_ref,
                     wcs_ref, wcn_ref, pb_ref, out_ref):
    a = a_ref[...]          # (Bt, N, N)   row-normalized adjacency (cdt)
    ared = ared_ref[...]    # (Bt, 2, N)   [ones/N ; colmean(A)]    (cdt)
    h = h_ref[...]          # (Bt, N, Din)                          (cdt)
    w1s = w1s_ref[...]      # (Din, Dh)
    w1n = w1n_ref[...]      # (Din, Dh)
    b1 = b1_ref[...]        # (1, Dh)   f32
    wcs = wcs_ref[...]      # (Dh, C)   = w2_self  @ wc_h
    wcn = wcn_ref[...]      # (Dh, C)   = w2_neigh @ wc_h
    pb = pb_ref[0]          # (Bt, C)   = perm @ wc_p + b2@wc_h + bc  (f32)

    cdt = h.dtype
    bt, n, din = h.shape
    dh = w1s.shape[1]

    # ---- SAGEConv layer 1 (mean aggregator), all Bt graphs at once ----
    ah = jnp.einsum('bij,bjd->bid', a, h,
                    preferred_element_type=jnp.float32)       # (Bt, N, Din) f32
    h_flat = h.reshape(bt * n, din)
    ah_flat = ah.astype(cdt).reshape(bt * n, din)
    h1 = (jnp.dot(h_flat, w1s, preferred_element_type=jnp.float32)
          + jnp.dot(ah_flat, w1n, preferred_element_type=jnp.float32)
          + b1)
    h1 = jnp.maximum(h1, 0.0).reshape(bt, n, dh).astype(cdt)  # (Bt, N, Dh)

    # ---- layer 2 + mean_nodes + classifier, pre-composed ----
    # red[:,0] = mean_n(h1), red[:,1] = colmean(A) @ h1 (single tiny MXU pass)
    red = jnp.einsum('bkn,bnh->bkh', ared, h1,
                     preferred_element_type=jnp.float32)       # (Bt, 2, Dh) f32
    m1 = red[:, 0, :].astype(cdt)                              # (Bt, Dh)
    ag = red[:, 1, :].astype(cdt)                              # (Bt, Dh)

    out_ref[0] = (jnp.dot(m1, wcs, preferred_element_type=jnp.float32)
                  + jnp.dot(ag, wcn, preferred_element_type=jnp.float32)
                  + pb)


def graphsage_forward(adj_norm, h, perm_features, params, *,
                      batch_block=None, compute_dtype=jnp.bfloat16):
    """adj_norm: (B,N,N) f32, h: (B,N,Din) f32, perm_features: (B,P) f32."""
    B, N, Din = h.shape
    P = perm_features.shape[1]
    Dh = params["w1_self"].shape[1]
    C = params["bc"].shape[1]

    if batch_block is None:
        # only split when each grid step still fills >= 256 MXU rows
        half = B // 2
        batch_block = half if (B % 2 == 0 and half >= 1 and half * N >= 256) else B
    Bt = batch_block
    assert B % Bt == 0, "batch must be divisible by batch_block"
    G = B // Bt

    cdt = compute_dtype
    itemsize = jnp.dtype(cdt).itemsize

    # ---- wrapper-side pre-composition (f32, full precision) ----
    wcs = jnp.dot(params["w2_self"], params["wc_h"], precision=HIGHEST).astype(cdt)
    wcn = jnp.dot(params["w2_neigh"], params["wc_h"], precision=HIGHEST).astype(cdt)
    perm_bias = (jnp.dot(perm_features, params["wc_p"], precision=HIGHEST)
                 + jnp.dot(params["b2"], params["wc_h"], precision=HIGHEST)
                 + params["bc"]).astype(jnp.float32).reshape(G, Bt, C)

    # fused reduction rows: [node-mean ; colmean(adj_norm)] per graph
    ones_row = jnp.full((B, 1, N), 1.0 / N, dtype=jnp.float32)
    colmean = jnp.mean(adj_norm, axis=1, keepdims=True)            # (B, 1, N)
    a_red = jnp.concatenate([ones_row, colmean], axis=1).astype(cdt)  # (B,2,N)

    a_c = adj_norm.astype(cdt)
    h_c = h.astype(cdt)
    w1s = params["w1_self"].astype(cdt)
    w1n = params["w1_neigh"].astype(cdt)
    b1 = params["b1"].astype(jnp.float32)

    flops = B * (2 * N * N * Din            # adjacency aggregation
                 + 2 * 2 * N * Din * Dh     # two layer-1 dots
                 + 2 * 2 * N * Dh           # fused mean/colmean einsum
                 + 2 * 2 * Dh * C)          # classifier dots
    bytes_accessed = (itemsize * (a_c.size + h_c.size + a_red.size
                                  + w1s.size + w1n.size + wcs.size + wcn.size)
                      + 4 * (b1.size + perm_bias.size + B * C))

    # explicit scoped-VMEM limit (v5e default is only 16MiB; v7x physical 64MiB)
    block_in = (Bt * N * N + Bt * N * Din + Bt * 2 * N) * itemsize
    weight_bytes = ((2 * Din * Dh + 2 * Dh * C) * itemsize
                    + (Dh + C) * 4 + Bt * C * 4)
    vmem_limit = int(min(64 << 20,
                         max(16 << 20, 6 * (2 * block_in + weight_bytes))))

    out = pl.pallas_call(
        graphsage_kernel,
        out_shape=jax.ShapeDtypeStruct((G, Bt, C), jnp.float32),
        grid_spec=pltpu.PrefetchScalarGridSpec(
            num_scalar_prefetch=0,
            grid=(G,),
            in_specs=[
                pl.BlockSpec((Bt, N, N), lambda g: (g, 0, 0)),     # adj_norm
                pl.BlockSpec((Bt, 2, N), lambda g: (g, 0, 0)),     # a_red
                pl.BlockSpec((Bt, N, Din), lambda g: (g, 0, 0)),   # h
                pl.BlockSpec((Din, Dh), lambda g: (0, 0)),         # w1_self
                pl.BlockSpec((Din, Dh), lambda g: (0, 0)),         # w1_neigh
                pl.BlockSpec((1, Dh), lambda g: (0, 0)),           # b1
                pl.BlockSpec((Dh, C), lambda g: (0, 0)),           # w2_self@wc_h
                pl.BlockSpec((Dh, C), lambda g: (0, 0)),           # w2_neigh@wc_h
                pl.BlockSpec((1, Bt, C), lambda g: (g, 0, 0)),     # perm_bias
            ],
            out_specs=pl.BlockSpec((1, Bt, C), lambda g: (g, 0, 0)),
        ),
        compiler_params=pltpu.CompilerParams(
            dimension_semantics=(("parallel",) if G > 1 else ("arbitrary",)),
            vmem_limit_bytes=vmem_limit),
        cost_estimate=pl.CostEstimate(flops=flops, transcendentals=0,
                                      bytes_accessed=int(bytes_accessed)),
    )(a_c, a_red, h_c, w1s, w1n, b1, wcs, wcn, perm_bias)

    return out.reshape(B, C)


def reference_forward(adj_norm, h, perm_features, params):
    h_n1 = jnp.einsum("bij,bjd->bid", adj_norm, h, precision=HIGHEST)
    h1 = (jnp.einsum("bnd,dh->bnh", h, params["w1_self"], precision=HIGHEST)
          + jnp.einsum("bnd,dh->bnh", h_n1, params["w1_neigh"], precision=HIGHEST)
          + params["b1"])
    h1 = jnp.maximum(h1, 0.0)
    h_n2 = jnp.einsum("bij,bjd->bid", adj_norm, h1, precision=HIGHEST)
    h2 = (jnp.einsum("bnd,dh->bnh", h1, params["w2_self"], precision=HIGHEST)
          + jnp.einsum("bnd,dh->bnh", h_n2, params["w2_neigh"], precision=HIGHEST)
          + params["b2"])
    hg = jnp.mean(h2, axis=1)
    combined = jnp.concatenate([hg, perm_features], axis=1)
    wc = jnp.concatenate([params["wc_h"], params["wc_p"]], axis=0)
    return jnp.dot(combined, wc, precision=HIGHEST) + params["bc"]


if __name__ == "__main__":
    B = 8            # graphs in the batch (single grid step at this size)
    N = 16           # nodes per graph
    input_dim = 8
    hidden_dim = 32
    perm_length = 8
    num_classes = 4

    key = jax.random.PRNGKey(0)
    keys = jax.random.split(key, 12)

    # dense random adjacency per graph, row-normalized by in-degree (mean agg)
    adj = (jax.random.uniform(keys[0], (B, N, N)) < 0.3).astype(jnp.float32)
    adj = adj * (1.0 - jnp.eye(N))                       # no self loops
    deg = jnp.sum(adj, axis=-1, keepdims=True)
    adj_norm = adj / jnp.maximum(deg, 1.0)               # zero rows stay zero

    h = jax.random.normal(keys[1], (B, N, input_dim), dtype=jnp.float32)
    perm_features = jax.random.normal(keys[2], (B, perm_length),
                                      dtype=jnp.float32)

    def init_w(k, shape, fan_in):
        return (jax.random.normal(k, shape, dtype=jnp.float32)
                / jnp.sqrt(jnp.float32(fan_in)))

    params = {
        "w1_self": init_w(keys[3], (input_dim, hidden_dim), input_dim),
        "w1_neigh": init_w(keys[4], (input_dim, hidden_dim), input_dim),
        "b1": 0.01 * jnp.ones((1, hidden_dim), jnp.float32),
        "w2_self": init_w(keys[5], (hidden_dim, hidden_dim), hidden_dim),
        "w2_neigh": init_w(keys[6], (hidden_dim, hidden_dim), hidden_dim),
        "b2": 0.01 * jnp.ones((1, hidden_dim), jnp.float32),
        "wc_h": init_w(keys[7], (hidden_dim, num_classes),
                       hidden_dim + perm_length),
        "wc_p": init_w(keys[8], (perm_length, num_classes),
                       hidden_dim + perm_length),
        "bc": 0.01 * jnp.ones((1, num_classes), jnp.float32),
    }

    ref = reference_forward(adj_norm, h, perm_features, params)
    ref = jax.block_until_ready(ref)

    # f32 path: bit-accurate check of the fused algebra
    out_f32 = graphsage_forward(adj_norm, h, perm_features, params,
                                compute_dtype=jnp.float32)
    out_f32 = jax.block_until_ready(out_f32)
    np.testing.assert_allclose(np.asarray(out_f32), np.asarray(ref),
                               rtol=1e-4, atol=1e-4)

    # default bf16-operand / f32-accumulate path (v6e/v7x MXU-native)
    out_bf16 = graphsage_forward(adj_norm, h, perm_features, params)
    out_bf16 = jax.block_until_ready(out_bf16)
    np.testing.assert_allclose(np.asarray(out_bf16), np.asarray(ref),
                               rtol=3e-2, atol=3e-2)

    print("KERNEL_OK")
</pallas_src>

<mosaic_0001>
module attributes {stable_mosaic.version = 11 : i64} {
  func.func @graphsage_kernel(%arg0: i32, %arg1: memref<8x16x16xf32, #tpu.memory_space<vmem>>, %arg2: memref<8x2x16xf32, #tpu.memory_space<vmem>>, %arg3: memref<8x16x8xf32, #tpu.memory_space<vmem>>, %arg4: memref<8x32xf32, #tpu.memory_space<vmem>>, %arg5: memref<8x32xf32, #tpu.memory_space<vmem>>, %arg6: memref<1x32xf32, #tpu.memory_space<vmem>>, %arg7: memref<32x4xf32, #tpu.memory_space<vmem>>, %arg8: memref<32x4xf32, #tpu.memory_space<vmem>>, %arg9: memref<1x8x4xf32, #tpu.memory_space<vmem>>, %arg10: memref<1x8x4xf32, #tpu.memory_space<vmem>>) attributes {dimension_semantics = [#tpu.dimension_semantics<arbitrary>], iteration_bounds = array<i64: 1>, scalar_prefetch = 0 : i64, scratch_operands = 0 : i64, tpu.core_type = #tpu.core_type<tc>, window_params = [{transform_indices = @transform_0, window_bounds = array<i64: 8, 16, 16>}, {transform_indices = @transform_1, window_bounds = array<i64: 8, 2, 16>}, {transform_indices = @transform_2, window_bounds = array<i64: 8, 16, 8>}, {pipeline_mode = #tpu.pipeline_mode<synchronous>, transform_indices = @transform_3, window_bounds = array<i64: 8, 32>}, {pipeline_mode = #tpu.pipeline_mode<synchronous>, transform_indices = @transform_4, window_bounds = array<i64: 8, 32>}, {pipeline_mode = #tpu.pipeline_mode<synchronous>, transform_indices = @transform_5, window_bounds = array<i64: 1, 32>}, {pipeline_mode = #tpu.pipeline_mode<synchronous>, transform_indices = @transform_6, window_bounds = array<i64: 32, 4>}, {pipeline_mode = #tpu.pipeline_mode<synchronous>, transform_indices = @transform_7, window_bounds = array<i64: 32, 4>}, {transform_indices = @transform_8, window_bounds = array<i64: 1, 8, 4>}, {transform_indices = @transform_9, window_bounds = array<i64: 1, 8, 4>}]} {
    %c0 = arith.constant 0 : index
    %c0_0 = arith.constant 0 : index
    %c0_1 = arith.constant 0 : index
    %0 = vector.load %arg1[%c0, %c0_0, %c0_1] : memref<8x16x16xf32, #tpu.memory_space<vmem>>, vector<8x16x16xf32>
    %c0_2 = arith.constant 0 : index
    %c0_3 = arith.constant 0 : index
    %c0_4 = arith.constant 0 : index
    %1 = vector.load %arg2[%c0_2, %c0_3, %c0_4] : memref<8x2x16xf32, #tpu.memory_space<vmem>>, vector<8x2x16xf32>
    %c0_5 = arith.constant 0 : index
    %c0_6 = arith.constant 0 : index
    %c0_7 = arith.constant 0 : index
    %2 = vector.load %arg3[%c0_5, %c0_6, %c0_7] : memref<8x16x8xf32, #tpu.memory_space<vmem>>, vector<8x16x8xf32>
    %c0_8 = arith.constant 0 : index
    %c0_9 = arith.constant 0 : index
    %3 = vector.load %arg4[%c0_8, %c0_9] : memref<8x32xf32, #tpu.memory_space<vmem>>, vector<8x32xf32>
    %c0_10 = arith.constant 0 : index
    %c0_11 = arith.constant 0 : index
    %4 = vector.load %arg5[%c0_10, %c0_11] : memref<8x32xf32, #tpu.memory_space<vmem>>, vector<8x32xf32>
    %c0_12 = arith.constant 0 : index
    %c0_13 = arith.constant 0 : index
    %5 = vector.load %arg6[%c0_12, %c0_13] : memref<1x32xf32, #tpu.memory_space<vmem>>, vector<1x32xf32>
    %c0_14 = arith.constant 0 : index
    %c0_15 = arith.constant 0 : index
    %6 = vector.load %arg7[%c0_14, %c0_15] : memref<32x4xf32, #tpu.memory_space<vmem>>, vector<32x4xf32>
    %c0_16 = arith.constant 0 : index
    %c0_17 = arith.constant 0 : index
    %7 = vector.load %arg8[%c0_16, %c0_17] : memref<32x4xf32, #tpu.memory_space<vmem>>, vector<32x4xf32>
    %c0_18 = arith.constant 0 : index
    %c0_19 = arith.constant 0 : index
    %c0_20 = arith.constant 0 : index
    %8 = vector.load %arg9[%c0_18, %c0_19, %c0_20] : memref<1x8x4xf32, #tpu.memory_space<vmem>>, vector<1x8x4xf32>
    %9 = vector.shape_cast %8 : vector<1x8x4xf32> to vector<8x4xf32>
    "tpu.trace_start"() <{level = 10 : i32, message = "bij,bjd->bid"}> : () -> ()
    %cst = arith.constant dense<0.000000e+00> : vector<8x16x8xf32>
    %10 = tpu.matmul %0, %2, %cst {dimension_numbers = #tpu.dot_dimension_numbers<[2], [1], [1], [2], [0, 0, 0, 1, 1, 2], [0], [0]>} : vector<8x16x16xf32>, vector<8x16x8xf32>, vector<8x16x8xf32> -> vector<8x16x8xf32>
    "tpu.trace_stop"() : () -> ()
    %11 = vector.shape_cast %2 : vector<8x16x8xf32> to vector<128x8xf32>
    %12 = vector.shape_cast %10 : vector<8x16x8xf32> to vector<128x8xf32>
    %cst_21 = arith.constant dense<0.000000e+00> : vector<128x32xf32>
    %13 = tpu.matmul %11, %3, %cst_21 {dimension_numbers = #tpu.dot_dimension_numbers<[1], [0], [0], [1], [0, 0, 1, 1], [], []>} : vector<128x8xf32>, vector<8x32xf32>, vector<128x32xf32> -> vector<128x32xf32>
    %cst_22 = arith.constant dense<0.000000e+00> : vector<128x32xf32>
    %14 = tpu.matmul %12, %4, %cst_22 {dimension_numbers = #tpu.dot_dimension_numbers<[1], [0], [0], [1], [0, 0, 1, 1], [], []>} : vector<128x8xf32>, vector<8x32xf32>, vector<128x32xf32> -> vector<128x32xf32>
    %15 = arith.addf %13, %14 : vector<128x32xf32>
    %16 = vector.broadcast %5 : vector<1x32xf32> to vector<128x32xf32>
    %17 = arith.addf %15, %16 : vector<128x32xf32>
    %cst_23 = arith.constant 0.000000e+00 : f32
    %18 = vector.broadcast %cst_23 : f32 to vector<128x32xf32>
    %19 = arith.maximumf %17, %18 : vector<128x32xf32>
    %20 = vector.shape_cast %19 : vector<128x32xf32> to vector<8x16x32xf32>
    "tpu.trace_start"() <{level = 10 : i32, message = "bkn,bnh->bkh"}> : () -> ()
    %cst_24 = arith.constant dense<0.000000e+00> : vector<8x2x32xf32>
    %21 = tpu.matmul %1, %20, %cst_24 {dimension_numbers = #tpu.dot_dimension_numbers<[2], [1], [1], [2], [0, 0, 0, 1, 1, 2], [0], [0]>} : vector<8x2x16xf32>, vector<8x16x32xf32>, vector<8x2x32xf32> -> vector<8x2x32xf32>
    "tpu.trace_stop"() : () -> ()
    %22 = vector.extract_strided_slice %21 {offsets = [0, 0, 0], sizes = [8, 1, 32], strides = [1, 1, 1]} : vector<8x2x32xf32> to vector<8x1x32xf32>
    %23 = vector.shape_cast %22 : vector<8x1x32xf32> to vector<8x32xf32>
    %24 = vector.extract_strided_slice %21 {offsets = [0, 1, 0], sizes = [8, 1, 32], strides = [1, 1, 1]} : vector<8x2x32xf32> to vector<8x1x32xf32>
    %25 = vector.shape_cast %24 : vector<8x1x32xf32> to vector<8x32xf32>
    %cst_25 = arith.constant dense<0.000000e+00> : vector<8x4xf32>
    %26 = tpu.matmul %23, %6, %cst_25 {dimension_numbers = #tpu.dot_dimension_numbers<[1], [0], [0], [1], [0, 0, 1, 1], [], []>} : vector<8x32xf32>, vector<32x4xf32>, vector<8x4xf32> -> vector<8x4xf32>
    %cst_26 = arith.constant dense<0.000000e+00> : vector<8x4xf32>
    %27 = tpu.matmul %25, %7, %cst_26 {dimension_numbers = #tpu.dot_dimension_numbers<[1], [0], [0], [1], [0, 0, 1, 1], [], []>} : vector<8x32xf32>, vector<32x4xf32>, vector<8x4xf32> -> vector<8x4xf32>
    %28 = arith.addf %26, %27 : vector<8x4xf32>
    %29 = arith.addf %28, %9 : vector<8x4xf32>
    %c0_27 = arith.constant 0 : index
    %c0_28 = arith.constant 0 : index
    %c0_29 = arith.constant 0 : index
    %30 = vector.load %arg10[%c0_27, %c0_28, %c0_29] : memref<1x8x4xf32, #tpu.memory_space<vmem>>, vector<1x8x4xf32>
    %31 = vector.shape_cast %30 : vector<1x8x4xf32> to vector<8x4xf32>
    %32 = vector.shape_cast %29 : vector<8x4xf32> to vector<1x8x4xf32>
    tpu.vector_store %arg10[%c0_27, %c0_28, %c0_29], %32 {strides = array<i32>} : memref<1x8x4xf32, #tpu.memory_space<vmem>>, vector<1x8x4xf32>,
    return
  }
  func.func @transform_0(%arg0: i32) -> (i32, i32, i32) {
    %c0_i32 = arith.constant 0 : i32
    %c0_i32_0 = arith.constant 0 : i32
    %c0_i32_1 = arith.constant 0 : i32
    return %arg0, %c0_i32, %c0_i32_0 : i32, i32, i32
  }
  func.func @transform_1(%arg0: i32) -> (i32, i32, i32) {
    %c0_i32 = arith.constant 0 : i32
    %c0_i32_0 = arith.constant 0 : i32
    %c0_i32_1 = arith.constant 0 : i32
    return %arg0, %c0_i32, %c0_i32_0 : i32, i32, i32
  }
  func.func @transform_2(%arg0: i32) -> (i32, i32, i32) {
    %c0_i32 = arith.constant 0 : i32
    %c0_i32_0 = arith.constant 0 : i32
    %c0_i32_1 = arith.constant 0 : i32
    return %arg0, %c0_i32, %c0_i32_0 : i32, i32, i32
  }
  func.func @transform_3(%arg0: i32) -> (i32, i32) {
    %c0_i32 = arith.constant 0 : i32
    %c0_i32_0 = arith.constant 0 : i32
    %c0_i32_1 = arith.constant 0 : i32
    return %c0_i32, %c0_i32_0 : i32, i32
  }
  func.func @transform_4(%arg0: i32) -> (i32, i32) {
    %c0_i32 = arith.constant 0 : i32
    %c0_i32_0 = arith.constant 0 : i32
    %c0_i32_1 = arith.constant 0 : i32
    return %c0_i32, %c0_i32_0 : i32, i32
  }
  func.func @transform_5(%arg0: i32) -> (i32, i32) {
    %c0_i32 = arith.constant 0 : i32
    %c0_i32_0 = arith.constant 0 : i32
    %c0_i32_1 = arith.constant 0 : i32
    return %c0_i32, %c0_i32_0 : i32, i32
  }
  func.func @transform_6(%arg0: i32) -> (i32, i32) {
    %c0_i32 = arith.constant 0 : i32
    %c0_i32_0 = arith.constant 0 : i32
    %c0_i32_1 = arith.constant 0 : i32
    return %c0_i32, %c0_i32_0 : i32, i32
  }
  func.func @transform_7(%arg0: i32) -> (i32, i32) {
    %c0_i32 = arith.constant 0 : i32
    %c0_i32_0 = arith.constant 0 : i32
    %c0_i32_1 = arith.constant 0 : i32
    return %c0_i32, %c0_i32_0 : i32, i32
  }
  func.func @transform_8(%arg0: i32) -> (i32, i32, i32) {
    %c0_i32 = arith.constant 0 : i32
    %c0_i32_0 = arith.constant 0 : i32
    %c0_i32_1 = arith.constant 0 : i32
    return %arg0, %c0_i32, %c0_i32_0 : i32, i32, i32
  }
  func.func @transform_9(%arg0: i32) -> (i32, i32, i32) {
    %c0_i32 = arith.constant 0 : i32
    %c0_i32_0 = arith.constant 0 : i32
    %c0_i32_1 = arith.constant 0 : i32
    return %arg0, %c0_i32, %c0_i32_0 : i32, i32, i32
  }
}

</mosaic_0001>

<llo_original>
// kernel: tpu_custom_call.1
$region0: #{tpu_custom_call.1}
  #allocation0 [shape = 'u32[]', space=smem, size = 0x4, offset = 0x4, fixed_abs, tag = 'smem constant byte address 0x4 - core index']
  #allocation1 [shape = 'u32[144,128]{1,0:T(1,128)}', space=vmem, size = 0x12000, scoped, tag = 'internal scratch']
  %s0 = inlined_call_operand.vmem [shape: f32[8,16,16], index: 0, kind: input, shape index: {}]
  %s1 = inlined_call_operand.vmem [shape: f32[8,2,16], index: 1, kind: input, shape index: {}]
  %s2 = inlined_call_operand.vmem [shape: f32[8,16,8], index: 2, kind: input, shape index: {}]
  %s3 = inlined_call_operand.vmem [shape: f32[8,32], index: 3, kind: input, shape index: {}]
  %s4 = inlined_call_operand.vmem [shape: f32[8,32], index: 4, kind: input, shape index: {}]
  %s5 = inlined_call_operand.vmem [shape: f32[1,32], index: 5, kind: input, shape index: {}]
  %s6 = inlined_call_operand.vmem [shape: f32[32,4], index: 6, kind: input, shape index: {}]
  %s7 = inlined_call_operand.vmem [shape: f32[32,4], index: 7, kind: input, shape index: {}]
  %s8 = inlined_call_operand.vmem [shape: f32[1,8,4], index: 8, kind: input, shape index: {}]
  %s9 = inlined_call_operand.vmem [shape: f32[1,8,4], index: 9, kind: output, shape index: {}]
  %s10 = sld [smem:[#allocation0]]
  $region46: #{tpu_custom_call.1} parent=0
    _
  %s12 = ssub.s32 1, %s10
  %s13 = scalar_select 0, %s12, %s10
  // Predicated region
  $region2: #{tpu_custom_call.1} parent=0 // pred_check
    _
  $region3: #{tpu_custom_call.1} parent=0 // pred_check_branch
    %15 = sbr.rel (0) target = $region5
  $region4: #{tpu_custom_call.1} parent=0 // pred_region
    _
  $region5: #{tpu_custom_call.1} parent=0 // pred_fallthru
    _
  // Predicated region
  $region6: #{tpu_custom_call.1} parent=0 // pred_check
    _
  $region7: #{tpu_custom_call.1} parent=0 // pred_check_branch
    %17 = sbr.rel (0) target = $region9
  $region8: #{tpu_custom_call.1} parent=0 // pred_region
    _
  $region9: #{tpu_custom_call.1} parent=0 // pred_fallthru
    _
  // Predicated region
  $region10: #{tpu_custom_call.1} parent=0 // pred_check
    _
  $region11: #{tpu_custom_call.1} parent=0 // pred_check_branch
    %19 = sbr.rel (0) target = $region13
  $region12: #{tpu_custom_call.1} parent=0 // pred_region
    _
  $region13: #{tpu_custom_call.1} parent=0 // pred_fallthru
    _
  // Predicated region
  $region14: #{tpu_custom_call.1} parent=0 // pred_check
    _
  $region15: #{tpu_custom_call.1} parent=0 // pred_check_branch
    %21 = sbr.rel (0) target = $region17
  $region16: #{tpu_custom_call.1} parent=0 // pred_region
    _
  $region17: #{tpu_custom_call.1} parent=0 // pred_fallthru
    _
  // Predicated region
  $region18: #{tpu_custom_call.1} parent=0 // pred_check
    _
  $region19: #{tpu_custom_call.1} parent=0 // pred_check_branch
    %23 = sbr.rel (0) target = $region21
  $region20: #{tpu_custom_call.1} parent=0 // pred_region
    _
  $region21: #{tpu_custom_call.1} parent=0 // pred_fallthru
    _
  // Predicated region
  $region22: #{tpu_custom_call.1} parent=0 // pred_check
    _
  $region23: #{tpu_custom_call.1} parent=0 // pred_check_branch
    %25 = sbr.rel (0) target = $region25
  $region24: #{tpu_custom_call.1} parent=0 // pred_region
    _
  $region25: #{tpu_custom_call.1} parent=0 // pred_fallthru
    _
  // Predicated region
  $region26: #{tpu_custom_call.1} parent=0 // pred_check
    _
  $region27: #{tpu_custom_call.1} parent=0 // pred_check_branch
    %27 = sbr.rel (0) target = $region29
  $region28: #{tpu_custom_call.1} parent=0 // pred_region
    _
  $region29: #{tpu_custom_call.1} parent=0 // pred_fallthru
    _
  // Predicated region
  $region30: #{tpu_custom_call.1} parent=0 // pred_check
    _
  $region31: #{tpu_custom_call.1} parent=0 // pred_check_branch
    %29 = sbr.rel (0) target = $region33
  $region32: #{tpu_custom_call.1} parent=0 // pred_region
    _
  $region33: #{tpu_custom_call.1} parent=0 // pred_fallthru
    _
  // Predicated region
  $region34: #{tpu_custom_call.1} parent=0 // pred_check
    _
  $region35: #{tpu_custom_call.1} parent=0 // pred_check_branch
    %31 = sbr.rel (0) target = $region37
  $region36: #{tpu_custom_call.1} parent=0 // pred_region
    _
  $region37: #{tpu_custom_call.1} parent=0 // pred_fallthru
    _
  %v32 = vld [vmem:[%s0] sm:$0xff]
  %v33 = vld [vmem:[%s0 + $0x8] sm:$0xff]
  %v34 = vld [vmem:[%s0 + $0x10] sm:$0xff]
  %v35 = vld [vmem:[%s0 + $0x18] sm:$0xff]
  %v36 = vld [vmem:[%s0 + $0x20] sm:$0xff]
  %v37 = vld [vmem:[%s0 + $0x28] sm:$0xff]
  %v38 = vld [vmem:[%s0 + $0x30] sm:$0xff]
  %v39 = vld [vmem:[%s0 + $0x38] sm:$0xff]
  %v40 = vld [vmem:[%s0 + $0x40] sm:$0xff]
  %v41 = vld [vmem:[%s0 + $0x48] sm:$0xff]
  %v42 = vld [vmem:[%s0 + $0x50] sm:$0xff]
  %v43 = vld [vmem:[%s0 + $0x58] sm:$0xff]
  %v44 = vld [vmem:[%s0 + $0x60] sm:$0xff]
  %v45 = vld [vmem:[%s0 + $0x68] sm:$0xff]
  %v46 = vld [vmem:[%s0 + $0x70] sm:$0xff]
  %v47 = vld [vmem:[%s0 + $0x78] sm:$0xff]
  %v48 = vld [vmem:[%s1] sm:$0x3]
  %v49 = vld [vmem:[%s1 + $0x2] sm:$0x3]
  %v50 = vld [vmem:[%s1 + $0x4] sm:$0x3]
  %v51 = vld [vmem:[%s1 + $0x6] sm:$0x3]
  %v52 = vld [vmem:[%s1 + $0x8] sm:$0x3]
  %v53 = vld [vmem:[%s1 + $0xa] sm:$0x3]
  %v54 = vld [vmem:[%s1 + $0xc] sm:$0x3]
  %v55 = vld [vmem:[%s1 + $0xe] sm:$0x3]
  %v56 = vld [vmem:[%s2] sm:$0xff]
  %v57 = vld [vmem:[%s2 + $0x8] sm:$0xff]
  %v58 = vld [vmem:[%s2 + $0x10] sm:$0xff]
  %v59 = vld [vmem:[%s2 + $0x18] sm:$0xff]
  %v60 = vld [vmem:[%s2 + $0x20] sm:$0xff]
  %v61 = vld [vmem:[%s2 + $0x28] sm:$0xff]
  %v62 = vld [vmem:[%s2 + $0x30] sm:$0xff]
  %v63 = vld [vmem:[%s2 + $0x38] sm:$0xff]
  %v64 = vld [vmem:[%s2 + $0x40] sm:$0xff]
  %v65 = vld [vmem:[%s2 + $0x48] sm:$0xff]
  %v66 = vld [vmem:[%s2 + $0x50] sm:$0xff]
  %v67 = vld [vmem:[%s2 + $0x58] sm:$0xff]
  %v68 = vld [vmem:[%s2 + $0x60] sm:$0xff]
  %v69 = vld [vmem:[%s2 + $0x68] sm:$0xff]
  %v70 = vld [vmem:[%s2 + $0x70] sm:$0xff]
  %v71 = vld [vmem:[%s2 + $0x78] sm:$0xff]
  %v72 = vld [vmem:[%s3] sm:$0xff]
  %v73 = vld [vmem:[%s4] sm:$0xff]
  %v74 = vld [vmem:[%s5] sm:$0x1]
  %v75 = vld [vmem:[%s6] sm:$0xff]
  %v76 = vld [vmem:[%s6 + $0x8] sm:$0xff]
  %v77 = vld [vmem:[%s6 + $0x10] sm:$0xff]
  %v78 = vld [vmem:[%s6 + $0x18] sm:$0xff]
  %v79 = vld [vmem:[%s7] sm:$0xff]
  %v80 = vld [vmem:[%s7 + $0x8] sm:$0xff]
  %v81 = vld [vmem:[%s7 + $0x10] sm:$0xff]
  %v82 = vld [vmem:[%s7 + $0x18] sm:$0xff]
  %v83 = vld [vmem:[%s8] sm:$0xff]
  %vm84 = vcmask 130048
  %v86 = vsel %vm84, %v32, 0
  %v89 = vsel %vm84, %v33, 0
  %91 = vmatprep.subr.mxu0 0.0
  %92 = vmatpush1.msra.mxu0 %v56
  %93 = vmatprep.subr.mxu0 0.0
  %94 = vmatpush1.msra.mxu0 %v57
  %95 = vmatprep.subr.mxu0 0.0
  %96 = vmatpush1.msra.mxu0 0.0
  %97 = vmatprep.subr.mxu0 0.0
  %98 = vmatpush1.msra.mxu0 0.0
  %99 = vmatprep.subr.mxu0 0.0
  %100 = vmatpush1.msra.mxu0 0.0
  %101 = vmatprep.subr.mxu0 0.0
  %102 = vmatpush1.msra.mxu0 0.0
  %103 = vmatprep.subr.mxu0 0.0
  %104 = vmatpush1.msra.mxu0 0.0
  %105 = vmatprep.subr.mxu0 0.0
  %106 = vmatpush1.msra.mxu0 0.0
  %107 = vmatprep.subr.mxu0 0.0
  %108 = vmatpush1.msra.mxu0 0.0
  %109 = vmatprep.subr.mxu0 0.0
  %110 = vmatpush1.msra.mxu0 0.0
  %111 = vmatprep.subr.mxu0 0.0
  %112 = vmatpush1.msra.mxu0 0.0
  %113 = vmatprep.subr.mxu0 0.0
  %114 = vmatpush1.msra.mxu0 0.0
  %115 = vmatprep.subr.mxu0 0.0
  %116 = vmatpush1.msra.mxu0 0.0
  %117 = vmatprep.subr.mxu0 0.0
  %118 = vmatpush1.msra.mxu0 0.0
  %119 = vmatprep.subr.mxu0 0.0
  %120 = vmatpush1.msra.mxu0 0.0
  %121 = vmatprep.subr.mxu0 0.0
  %122 = vmatpush1.msra.mxu0 0.0
  %123 = vmatprep.subr.mxu0 0.0
  %124 = vmatpush1.msra.mxu0 0.0
  %125 = vmatprep.subr.mxu0 0.0
  %126 = vmatpush1.msra.mxu0 0.0
  %127 = vmatprep.subr.mxu0 0.0
  %128 = vmatpush1.msra.mxu0 0.0
  %129 = vmatprep.subr.mxu0 0.0
  %130 = vmatpush1.msra.mxu0 0.0
  %131 = vmatprep.subr.mxu0 0.0
  %132 = vmatpush1.msra.mxu0 0.0
  %133 = vmatprep.subr.mxu0 0.0
  %134 = vmatpush1.msra.mxu0 0.0
  %135 = vmatprep.subr.mxu0 0.0
  %136 = vmatpush1.msra.mxu0 0.0
  %137 = vmatprep.subr.mxu0 0.0
  %138 = vmatpush1.msra.mxu0 0.0
  %139 = vmatprep.subr.mxu0 0.0
  %140 = vmatpush1.msra.mxu0 0.0
  %141 = vmatprep.subr.mxu0 0.0
  %142 = vmatpush1.msra.mxu0 0.0
  %143 = vmatprep.subr.mxu0 0.0
  %144 = vmatpush1.msra.mxu0 0.0
  %145 = vmatprep.subr.mxu0 0.0
  %146 = vmatpush1.msra.mxu0 0.0
  %147 = vmatprep.subr.mxu0 0.0
  %148 = vmatpush1.msra.mxu0 0.0
  %149 = vmatprep.subr.mxu0 0.0
  %150 = vmatpush1.msra.mxu0 0.0
  %151 = vmatprep.subr.mxu0 0.0
  %152 = vmatpush1.msra.mxu0 0.0
  %153 = vmatprep.subr.mxu0 0.0
  %154 = vmatpush1.msra.mxu0 0.0
  %155 = vmatprep.mubr.f32.mxu0 0.0
  %156 = vmatmul.mubr.f32.gmra.mrb[0].mxu0 %v86
  %v157 = vpop.f32.mrb[0].mxu0
  %v158 = vadd.f32 0.0, %v157
  %v159 = vpop.f32.mrb[0].mxu0
  %160 = vmatprep.mubr.f32.mxu0 0.0
  %161 = vmatmul.mubr.f32.gmra.mrb[0].mxu0 %v89
  %v162 = vpop.f32.mrb[0].mxu0
  %v163 = vadd.f32 0.0, %v162
  %v164 = vpop.f32.mrb[0].mxu0
  %165 = vdwg.mxu0
  %v167 = vsel %vm84, %v34, 0
  %v170 = vsel %vm84, %v35, 0
  %172 = vmatprep.subr.mxu0 0.0
  %173 = vmatpush1.msra.mxu0 %v58
  %174 = vmatprep.subr.mxu0 0.0
  %175 = vmatpush1.msra.mxu0 %v59
  %176 = vmatprep.subr.mxu0 0.0
  %177 = vmatpush1.msra.mxu0 0.0
  %178 = vmatprep.subr.mxu0 0.0
  %179 = vmatpush1.msra.mxu0 0.0
  %180 = vmatprep.subr.mxu0 0.0
  %181 = vmatpush1.msra.mxu0 0.0
  %182 = vmatprep.subr.mxu0 0.0
  %183 = vmatpush1.msra.mxu0 0.0
  %184 = vmatprep.subr.mxu0 0.0
  %185 = vmatpush1.msra.mxu0 0.0
  %186 = vmatprep.subr.mxu0 0.0
  %187 = vmatpush1.msra.mxu0 0.0
  %188 = vmatprep.subr.mxu0 0.0
  %189 = vmatpush1.msra.mxu0 0.0
  %190 = vmatprep.subr.mxu0 0.0
  %191 = vmatpush1.msra.mxu0 0.0
  %192 = vmatprep.subr.mxu0 0.0
  %193 = vmatpush1.msra.mxu0 0.0
  %194 = vmatprep.subr.mxu0 0.0
  %195 = vmatpush1.msra.mxu0 0.0
  %196 = vmatprep.subr.mxu0 0.0
  %197 = vmatpush1.msra.mxu0 0.0
  %198 = vmatprep.subr.mxu0 0.0
  %199 = vmatpush1.msra.mxu0 0.0
  %200 = vmatprep.subr.mxu0 0.0
  %201 = vmatpush1.msra.mxu0 0.0
  %202 = vmatprep.subr.mxu0 0.0
  %203 = vmatpush1.msra.mxu0 0.0
  %204 = vmatprep.subr.mxu0 0.0
  %205 = vmatpush1.msra.mxu0 0.0
  %206 = vmatprep.subr.mxu0 0.0
  %207 = vmatpush1.msra.mxu0 0.0
  %208 = vmatprep.subr.mxu0 0.0
  %209 = vmatpush1.msra.mxu0 0.0
  %210 = vmatprep.subr.mxu0 0.0
  %211 = vmatpush1.msra.mxu0 0.0
  %212 = vmatprep.subr.mxu0 0.0
  %213 = vmatpush1.msra.mxu0 0.0
  %214 = vmatprep.subr.mxu0 0.0
  %215 = vmatpush1.msra.mxu0 0.0
  %216 = vmatprep.subr.mxu0 0.0
  %217 = vmatpush1.msra.mxu0 0.0
  %218 = vmatprep.subr.mxu0 0.0
  %219 = vmatpush1.msra.mxu0 0.0
  %220 = vmatprep.subr.mxu0 0.0
  %221 = vmatpush1.msra.mxu0 0.0
  %222 = vmatprep.subr.mxu0 0.0
  %223 = vmatpush1.msra.mxu0 0.0
  %224 = vmatprep.subr.mxu0 0.0
  %225 = vmatpush1.msra.mxu0 0.0
  %226 = vmatprep.subr.mxu0 0.0
  %227 = vmatpush1.msra.mxu0 0.0
  %228 = vmatprep.subr.mxu0 0.0
  %229 = vmatpush1.msra.mxu0 0.0
  %230 = vmatprep.subr.mxu0 0.0
  %231 = vmatpush1.msra.mxu0 0.0
  %232 = vmatprep.subr.mxu0 0.0
  %233 = vmatpush1.msra.mxu0 0.0
  %234 = vmatprep.subr.mxu0 0.0
  %235 = vmatpush1.msra.mxu0 0.0
  %236 = vmatprep.mubr.f32.mxu0 0.0
  %237 = vmatmul.mubr.f32.gmra.mrb[0].mxu0 %v167
  %v238 = vpop.f32.mrb[0].mxu0
  %v239 = vadd.f32 0.0, %v238
  %v240 = vpop.f32.mrb[0].mxu0
  %241 = vmatprep.mubr.f32.mxu0 0.0
  %242 = vmatmul.mubr.f32.gmra.mrb[0].mxu0 %v170
  %v243 = vpop.f32.mrb[0].mxu0
  %v244 = vadd.f32 0.0, %v243
  %v245 = vpop.f32.mrb[0].mxu0
  %246 = vdwg.mxu0
  %v248 = vsel %vm84, %v36, 0
  %v251 = vsel %vm84, %v37, 0
  %253 = vmatprep.subr.mxu0 0.0
  %254 = vmatpush1.msra.mxu0 %v60
  %255 = vmatprep.subr.mxu0 0.0
  %256 = vmatpush1.msra.mxu0 %v61
  %257 = vmatprep.subr.mxu0 0.0
  %258 = vmatpush1.msra.mxu0 0.0
  %259 = vmatprep.subr.mxu0 0.0
  %260 = vmatpush1.msra.mxu0 0.0
  %261 = vmatprep.subr.mxu0 0.0
  %262 = vmatpush1.msra.mxu0 0.0
  %263 = vmatprep.subr.mxu0 0.0
  %264 = vmatpush1.msra.mxu0 0.0
  %265 = vmatprep.subr.mxu0 0.0
  %266 = vmatpush1.msra.mxu0 0.0
  %267 = vmatprep.subr.mxu0 0.0
  %268 = vmatpush1.msra.mxu0 0.0
  %269 = vmatprep.subr.mxu0 0.0
  %270 = vmatpush1.msra.mxu0 0.0
  %271 = vmatprep.subr.mxu0 0.0
  %272 = vmatpush1.msra.mxu0 0.0
  %273 = vmatprep.subr.mxu0 0.0
  %274 = vmatpush1.msra.mxu0 0.0
  %275 = vmatprep.subr.mxu0 0.0
  %276 = vmatpush1.msra.mxu0 0.0
  %277 = vmatprep.subr.mxu0 0.0
  %278 = vmatpush1.msra.mxu0 0.0
  %279 = vmatprep.subr.mxu0 0.0
  %280 = vmatpush1.msra.mxu0 0.0
  %281 = vmatprep.subr.mxu0 0.0
  %282 = vmatpush1.msra.mxu0 0.0
  %283 = vmatprep.subr.mxu0 0.0
  %284 = vmatpush1.msra.mxu0 0.0
  %285 = vmatprep.subr.mxu0 0.0
  %286 = vmatpush1.msra.mxu0 0.0
  %287 = vmatprep.subr.mxu0 0.0
  %288 = vmatpush1.msra.mxu0 0.0
  %289 = vmatprep.subr.mxu0 0.0
  %290 = vmatpush1.msra.mxu0 0.0
  %291 = vmatprep.subr.mxu0 0.0
  %292 = vmatpush1.msra.mxu0 0.0
  %293 = vmatprep.subr.mxu0 0.0
  %294 = vmatpush1.msra.mxu0 0.0
  %295 = vmatprep.subr.mxu0 0.0
  %296 = vmatpush1.msra.mxu0 0.0
  %297 = vmatprep.subr.mxu0 0.0
  %298 = vmatpush1.msra.mxu0 0.0
  %299 = vmatprep.subr.mxu0 0.0
  %300 = vmatpush1.msra.mxu0 0.0
  %301 = vmatprep.subr.mxu0 0.0
  %302 = vmatpush1.msra.mxu0 0.0
  %303 = vmatprep.subr.mxu0 0.0
  %304 = vmatpush1.msra.mxu0 0.0
  %305 = vmatprep.subr.mxu0 0.0
  %306 = vmatpush1.msra.mxu0 0.0
  %307 = vmatprep.subr.mxu0 0.0
  %308 = vmatpush1.msra.mxu0 0.0
  %309 = vmatprep.subr.mxu0 0.0
  %310 = vmatpush1.msra.mxu0 0.0
  %311 = vmatprep.subr.mxu0 0.0
  %312 = vmatpush1.msra.mxu0 0.0
  %313 = vmatprep.subr.mxu0 0.0
  %314 = vmatpush1.msra.mxu0 0.0
  %315 = vmatprep.subr.mxu0 0.0
  %316 = vmatpush1.msra.mxu0 0.0
  %317 = vmatprep.mubr.f32.mxu0 0.0
  %318 = vmatmul.mubr.f32.gmra.mrb[0].mxu0 %v248
  %v319 = vpop.f32.mrb[0].mxu0
  %v320 = vadd.f32 0.0, %v319
  %v321 = vpop.f32.mrb[0].mxu0
  %322 = vmatprep.mubr.f32.mxu0 0.0
  %323 = vmatmul.mubr.f32.gmra.mrb[0].mxu0 %v251
  %v324 = vpop.f32.mrb[0].mxu0
  %v325 = vadd.f32 0.0, %v324
  %v326 = vpop.f32.mrb[0].mxu0
  %327 = vdwg.mxu0
  %v329 = vsel %vm84, %v38, 0
  %v332 = vsel %vm84, %v39, 0
  %334 = vmatprep.subr.mxu0 0.0
  %335 = vmatpush1.msra.mxu0 %v62
  %336 = vmatprep.subr.mxu0 0.0
  %337 = vmatpush1.msra.mxu0 %v63
  %338 = vmatprep.subr.mxu0 0.0
  %339 = vmatpush1.msra.mxu0 0.0
  %340 = vmatprep.subr.mxu0 0.0
  %341 = vmatpush1.msra.mxu0 0.0
  %342 = vmatprep.subr.mxu0 0.0
  %343 = vmatpush1.msra.mxu0 0.0
  %344 = vmatprep.subr.mxu0 0.0
  %345 = vmatpush1.msra.mxu0 0.0
  %346 = vmatprep.subr.mxu0 0.0
  %347 = vmatpush1.msra.mxu0 0.0
  %348 = vmatprep.subr.mxu0 0.0
  %349 = vmatpush1.msra.mxu0 0.0
  %350 = vmatprep.subr.mxu0 0.0
  %351 = vmatpush1.msra.mxu0 0.0
  %352 = vmatprep.subr.mxu0 0.0
  %353 = vmatpush1.msra.mxu0 0.0
  %354 = vmatprep.subr.mxu0 0.0
  %355 = vmatpush1.msra.mxu0 0.0
  %356 = vmatprep.subr.mxu0 0.0
  %357 = vmatpush1.msra.mxu0 0.0
  %358 = vmatprep.subr.mxu0 0.0
  %359 = vmatpush1.msra.mxu0 0.0
  %360 = vmatprep.subr.mxu0 0.0
  %361 = vmatpush1.msra.mxu0 0.0
  %362 = vmatprep.subr.mxu0 0.0
  %363 = vmatpush1.msra.mxu0 0.0
  %364 = vmatprep.subr.mxu0 0.0
  %365 = vmatpush1.msra.mxu0 0.0
  %366 = vmatprep.subr.mxu0 0.0
  %367 = vmatpush1.msra.mxu0 0.0
  %368 = vmatprep.subr.mxu0 0.0
  %369 = vmatpush1.msra.mxu0 0.0
  %370 = vmatprep.subr.mxu0 0.0
  %371 = vmatpush1.msra.mxu0 0.0
  %372 = vmatprep.subr.mxu0 0.0
  %373 = vmatpush1.msra.mxu0 0.0
  %374 = vmatprep.subr.mxu0 0.0
  %375 = vmatpush1.msra.mxu0 0.0
  %376 = vmatprep.subr.mxu0 0.0
  %377 = vmatpush1.msra.mxu0 0.0
  %378 = vmatprep.subr.mxu0 0.0
  %379 = vmatpush1.msra.mxu0 0.0
  %380 = vmatprep.subr.mxu0 0.0
  %381 = vmatpush1.msra.mxu0 0.0
  %382 = vmatprep.subr.mxu0 0.0
  %383 = vmatpush1.msra.mxu0 0.0
  %384 = vmatprep.subr.mxu0 0.0
  %385 = vmatpush1.msra.mxu0 0.0
  %386 = vmatprep.subr.mxu0 0.0
  %387 = vmatpush1.msra.mxu0 0.0
  %388 = vmatprep.subr.mxu0 0.0
  %389 = vmatpush1.msra.mxu0 0.0
  %390 = vmatprep.subr.mxu0 0.0
  %391 = vmatpush1.msra.mxu0 0.0
  %392 = vmatprep.subr.mxu0 0.0
  %393 = vmatpush1.msra.mxu0 0.0
  %394 = vmatprep.subr.mxu0 0.0
  %395 = vmatpush1.msra.mxu0 0.0
  %396 = vmatprep.subr.mxu0 0.0
  %397 = vmatpush1.msra.mxu0 0.0
  %398 = vmatprep.mubr.f32.mxu0 0.0
  %399 = vmatmul.mubr.f32.gmra.mrb[0].mxu0 %v329
  %v400 = vpop.f32.mrb[0].mxu0
  %v401 = vadd.f32 0.0, %v400
  %v402 = vpop.f32.mrb[0].mxu0
  %403 = vmatprep.mubr.f32.mxu0 0.0
  %404 = vmatmul.mubr.f32.gmra.mrb[0].mxu0 %v332
  %v405 = vpop.f32.mrb[0].mxu0
  %v406 = vadd.f32 0.0, %v405
  %v407 = vpop.f32.mrb[0].mxu0
  %408 = vdwg.mxu0
  %v410 = vsel %vm84, %v40, 0
  %v413 = vsel %vm84, %v41, 0
  %415 = vmatprep.subr.mxu0 0.0
  %416 = vmatpush1.msra.mxu0 %v64
  %417 = vmatprep.subr.mxu0 0.0
  %418 = vmatpush1.msra.mxu0 %v65
  %419 = vmatprep.subr.mxu0 0.0
  %420 = vmatpush1.msra.mxu0 0.0
  %421 = vmatprep.subr.mxu0 0.0
  %422 = vmatpush1.msra.mxu0 0.0
  %423 = vmatprep.subr.mxu0 0.0
  %424 = vmatpush1.msra.mxu0 0.0
  %425 = vmatprep.subr.mxu0 0.0
  %426 = vmatpush1.msra.mxu0 0.0
  %427 = vmatprep.subr.mxu0 0.0
  %428 = vmatpush1.msra.mxu0 0.0
  %429 = vmatprep.subr.mxu0 0.0
  %430 = vmatpush1.msra.mxu0 0.0
  %431 = vmatprep.subr.mxu0 0.0
  %432 = vmatpush1.msra.mxu0 0.0
  %433 = vmatprep.subr.mxu0 0.0
  %434 = vmatpush1.msra.mxu0 0.0
  %435 = vmatprep.subr.mxu0 0.0
  %436 = vmatpush1.msra.mxu0 0.0
  %437 = vmatprep.subr.mxu0 0.0
  %438 = vmatpush1.msra.mxu0 0.0
  %439 = vmatprep.subr.mxu0 0.0
  %440 = vmatpush1.msra.mxu0 0.0
  %441 = vmatprep.subr.mxu0 0.0
  %442 = vmatpush1.msra.mxu0 0.0
  %443 = vmatprep.subr.mxu0 0.0
  %444 = vmatpush1.msra.mxu0 0.0
  %445 = vmatprep.subr.mxu0 0.0
  %446 = vmatpush1.msra.mxu0 0.0
  %447 = vmatprep.subr.mxu0 0.0
  %448 = vmatpush1.msra.mxu0 0.0
  %449 = vmatprep.subr.mxu0 0.0
  %450 = vmatpush1.msra.mxu0 0.0
  %451 = vmatprep.subr.mxu0 0.0
  %452 = vmatpush1.msra.mxu0 0.0
  %453 = vmatprep.subr.mxu0 0.0
  %454 = vmatpush1.msra.mxu0 0.0
  %455 = vmatprep.subr.mxu0 0.0
  %456 = vmatpush1.msra.mxu0 0.0
  %457 = vmatprep.subr.mxu0 0.0
  %458 = vmatpush1.msra.mxu0 0.0
  %459 = vmatprep.subr.mxu0 0.0
  %460 = vmatpush1.msra.mxu0 0.0
  %461 = vmatprep.subr.mxu0 0.0
  %462 = vmatpush1.msra.mxu0 0.0
  %463 = vmatprep.subr.mxu0 0.0
  %464 = vmatpush1.msra.mxu0 0.0
  %465 = vmatprep.subr.mxu0 0.0
  %466 = vmatpush1.msra.mxu0 0.0
  %467 = vmatprep.subr.mxu0 0.0
  %468 = vmatpush1.msra.mxu0 0.0
  %469 = vmatprep.subr.mxu0 0.0
  %470 = vmatpush1.msra.mxu0 0.0
  %471 = vmatprep.subr.mxu0 0.0
  %472 = vmatpush1.msra.mxu0 0.0
  %473 = vmatprep.subr.mxu0 0.0
  %474 = vmatpush1.msra.mxu0 0.0
  %475 = vmatprep.subr.mxu0 0.0
  %476 = vmatpush1.msra.mxu0 0.0
  %477 = vmatprep.subr.mxu0 0.0
  %478 = vmatpush1.msra.mxu0 0.0
  %479 = vmatprep.mubr.f32.mxu0 0.0
  %480 = vmatmul.mubr.f32.gmra.mrb[0].mxu0 %v410
  %v481 = vpop.f32.mrb[0].mxu0
  %v482 = vadd.f32 0.0, %v481
  %v483 = vpop.f32.mrb[0].mxu0
  %484 = vmatprep.mubr.f32.mxu0 0.0
  %485 = vmatmul.mubr.f32.gmra.mrb[0].mxu0 %v413
  %v486 = vpop.f32.mrb[0].mxu0
  %v487 = vadd.f32 0.0, %v486
  %v488 = vpop.f32.mrb[0].mxu0
  %489 = vdwg.mxu0
  %v491 = vsel %vm84, %v42, 0
  %v494 = vsel %vm84, %v43, 0
  %496 = vmatprep.subr.mxu0 0.0
  %497 = vmatpush1.msra.mxu0 %v66
  %498 = vmatprep.subr.mxu0 0.0
  %499 = vmatpush1.msra.mxu0 %v67
  %500 = vmatprep.subr.mxu0 0.0
  %501 = vmatpush1.msra.mxu0 0.0
  %502 = vmatprep.subr.mxu0 0.0
  %503 = vmatpush1.msra.mxu0 0.0
  %504 = vmatprep.subr.mxu0 0.0
  %505 = vmatpush1.msra.mxu0 0.0
  %506 = vmatprep.subr.mxu0 0.0
  %507 = vmatpush1.msra.mxu0 0.0
  %508 = vmatprep.subr.mxu0 0.0
  %509 = vmatpush1.msra.mxu0 0.0
  %510 = vmatprep.subr.mxu0 0.0
  %511 = vmatpush1.msra.mxu0 0.0
  %512 = vmatprep.subr.mxu0 0.0
  %513 = vmatpush1.msra.mxu0 0.0
  %514 = vmatprep.subr.mxu0 0.0
  %515 = vmatpush1.msra.mxu0 0.0
  %516 = vmatprep.subr.mxu0 0.0
  %517 = vmatpush1.msra.mxu0 0.0
  %518 = vmatprep.subr.mxu0 0.0
  %519 = vmatpush1.msra.mxu0 0.0
  %520 = vmatprep.subr.mxu0 0.0
  %521 = vmatpush1.msra.mxu0 0.0
  %522 = vmatprep.subr.mxu0 0.0
  %523 = vmatpush1.msra.mxu0 0.0
  %524 = vmatprep.subr.mxu0 0.0
  %525 = vmatpush1.msra.mxu0 0.0
  %526 = vmatprep.subr.mxu0 0.0
  %527 = vmatpush1.msra.mxu0 0.0
  %528 = vmatprep.subr.mxu0 0.0
  %529 = vmatpush1.msra.mxu0 0.0
  %530 = vmatprep.subr.mxu0 0.0
  %531 = vmatpush1.msra.mxu0 0.0
  %532 = vmatprep.subr.mxu0 0.0
  %533 = vmatpush1.msra.mxu0 0.0
  %534 = vmatprep.subr.mxu0 0.0
  %535 = vmatpush1.msra.mxu0 0.0
  %536 = vmatprep.subr.mxu0 0.0
  %537 = vmatpush1.msra.mxu0 0.0
  %538 = vmatprep.subr.mxu0 0.0
  %539 = vmatpush1.msra.mxu0 0.0
  %540 = vmatprep.subr.mxu0 0.0
  %541 = vmatpush1.msra.mxu0 0.0
  %542 = vmatprep.subr.mxu0 0.0
  %543 = vmatpush1.msra.mxu0 0.0
  %544 = vmatprep.subr.mxu0 0.0
  %545 = vmatpush1.msra.mxu0 0.0
  %546 = vmatprep.subr.mxu0 0.0
  %547 = vmatpush1.msra.mxu0 0.0
  %548 = vmatprep.subr.mxu0 0.0
  %549 = vmatpush1.msra.mxu0 0.0
  %550 = vmatprep.subr.mxu0 0.0
  %551 = vmatpush1.msra.mxu0 0.0
  %552 = vmatprep.subr.mxu0 0.0
  %553 = vmatpush1.msra.mxu0 0.0
  %554 = vmatprep.subr.mxu0 0.0
  %555 = vmatpush1.msra.mxu0 0.0
  %556 = vmatprep.subr.mxu0 0.0
  %557 = vmatpush1.msra.mxu0 0.0
  %558 = vmatprep.subr.mxu0 0.0
  %559 = vmatpush1.msra.mxu0 0.0
  %560 = vmatprep.mubr.f32.mxu0 0.0
  %561 = vmatmul.mubr.f32.gmra.mrb[0].mxu0 %v491
  %v562 = vpop.f32.mrb[0].mxu0
  %v563 = vadd.f32 0.0, %v562
  %v564 = vpop.f32.mrb[0].mxu0
  %565 = vmatprep.mubr.f32.mxu0 0.0
  %566 = vmatmul.mubr.f32.gmra.mrb[0].mxu0 %v494
  %v567 = vpop.f32.mrb[0].mxu0
  %v568 = vadd.f32 0.0, %v567
  %v569 = vpop.f32.mrb[0].mxu0
  %570 = vdwg.mxu0
  %v572 = vsel %vm84, %v44, 0
  %v575 = vsel %vm84, %v45, 0
  %577 = vmatprep.subr.mxu0 0.0
  %578 = vmatpush1.msra.mxu0 %v68
  %579 = vmatprep.subr.mxu0 0.0
  %580 = vmatpush1.msra.mxu0 %v69
  %581 = vmatprep.subr.mxu0 0.0
  %582 = vmatpush1.msra.mxu0 0.0
  %583 = vmatprep.subr.mxu0 0.0
  %584 = vmatpush1.msra.mxu0 0.0
  %585 = vmatprep.subr.mxu0 0.0
  %586 = vmatpush1.msra.mxu0 0.0
  %587 = vmatprep.subr.mxu0 0.0
  %588 = vmatpush1.msra.mxu0 0.0
  %589 = vmatprep.subr.mxu0 0.0
  %590 = vmatpush1.msra.mxu0 0.0
  %591 = vmatprep.subr.mxu0 0.0
  %592 = vmatpush1.msra.mxu0 0.0
  %593 = vmatprep.subr.mxu0 0.0
  %594 = vmatpush1.msra.mxu0 0.0
  %595 = vmatprep.subr.mxu0 0.0
  %596 = vmatpush1.msra.mxu0 0.0
  %597 = vmatprep.subr.mxu0 0.0
  %598 = vmatpush1.msra.mxu0 0.0
  %599 = vmatprep.subr.mxu0 0.0
  %600 = vmatpush1.msra.mxu0 0.0
  %601 = vmatprep.subr.mxu0 0.0
  %602 = vmatpush1.msra.mxu0 0.0
  %603 = vmatprep.subr.mxu0 0.0
  %604 = vmatpush1.msra.mxu0 0.0
  %605 = vmatprep.subr.mxu0 0.0
  %606 = vmatpush1.msra.mxu0 0.0
  %607 = vmatprep.subr.mxu0 0.0
  %608 = vmatpush1.msra.mxu0 0.0
  %609 = vmatprep.subr.mxu0 0.0
  %610 = vmatpush1.msra.mxu0 0.0
  %611 = vmatprep.subr.mxu0 0.0
  %612 = vmatpush1.msra.mxu0 0.0
  %613 = vmatprep.subr.mxu0 0.0
  %614 = vmatpush1.msra.mxu0 0.0
  %615 = vmatprep.subr.mxu0 0.0
  %616 = vmatpush1.msra.mxu0 0.0
  %617 = vmatprep.subr.mxu0 0.0
  %618 = vmatpush1.msra.mxu0 0.0
  %619 = vmatprep.subr.mxu0 0.0
  %620 = vmatpush1.msra.mxu0 0.0
  %621 = vmatprep.subr.mxu0 0.0
  %622 = vmatpush1.msra.mxu0 0.0
  %623 = vmatprep.subr.mxu0 0.0
  %624 = vmatpush1.msra.mxu0 0.0
  %625 = vmatprep.subr.mxu0 0.0
  %626 = vmatpush1.msra.mxu0 0.0
  %627 = vmatprep.subr.mxu0 0.0
  %628 = vmatpush1.msra.mxu0 0.0
  %629 = vmatprep.subr.mxu0 0.0
  %630 = vmatpush1.msra.mxu0 0.0
  %631 = vmatprep.subr.mxu0 0.0
  %632 = vmatpush1.msra.mxu0 0.0
  %633 = vmatprep.subr.mxu0 0.0
  %634 = vmatpush1.msra.mxu0 0.0
  %635 = vmatprep.subr.mxu0 0.0
  %636 = vmatpush1.msra.mxu0 0.0
  %637 = vmatprep.subr.mxu0 0.0
  %638 = vmatpush1.msra.mxu0 0.0
  %639 = vmatprep.subr.mxu0 0.0
  %640 = vmatpush1.msra.mxu0 0.0
  %641 = vmatprep.mubr.f32.mxu0 0.0
  %642 = vmatmul.mubr.f32.gmra.mrb[0].mxu0 %v572
  %v643 = vpop.f32.mrb[0].mxu0
  %v644 = vadd.f32 0.0, %v643
  %v645 = vpop.f32.mrb[0].mxu0
  %646 = vmatprep.mubr.f32.mxu0 0.0
  %647 = vmatmul.mubr.f32.gmra.mrb[0].mxu0 %v575
  %v648 = vpop.f32.mrb[0].mxu0
  %v649 = vadd.f32 0.0, %v648
  %v650 = vpop.f32.mrb[0].mxu0
  %651 = vdwg.mxu0
  %v653 = vsel %vm84, %v46, 0
  %v656 = vsel %vm84, %v47, 0
  %658 = vmatprep.subr.mxu0 0.0
  %659 = vmatpush1.msra.mxu0 %v70
  %660 = vmatprep.subr.mxu0 0.0
  %661 = vmatpush1.msra.mxu0 %v71
  %662 = vmatprep.subr.mxu0 0.0
  %663 = vmatpush1.msra.mxu0 0.0
  %664 = vmatprep.subr.mxu0 0.0
  %665 = vmatpush1.msra.mxu0 0.0
  %666 = vmatprep.subr.mxu0 0.0
  %667 = vmatpush1.msra.mxu0 0.0
  %668 = vmatprep.subr.mxu0 0.0
  %669 = vmatpush1.msra.mxu0 0.0
  %670 = vmatprep.subr.mxu0 0.0
  %671 = vmatpush1.msra.mxu0 0.0
  %672 = vmatprep.subr.mxu0 0.0
  %673 = vmatpush1.msra.mxu0 0.0
  %674 = vmatprep.subr.mxu0 0.0
  %675 = vmatpush1.msra.mxu0 0.0
  %676 = vmatprep.subr.mxu0 0.0
  %677 = vmatpush1.msra.mxu0 0.0
  %678 = vmatprep.subr.mxu0 0.0
  %679 = vmatpush1.msra.mxu0 0.0
  %680 = vmatprep.subr.mxu0 0.0
  %681 = vmatpush1.msra.mxu0 0.0
  %682 = vmatprep.subr.mxu0 0.0
  %683 = vmatpush1.msra.mxu0 0.0
  %684 = vmatprep.subr.mxu0 0.0
  %685 = vmatpush1.msra.mxu0 0.0
  %686 = vmatprep.subr.mxu0 0.0
  %687 = vmatpush1.msra.mxu0 0.0
  %688 = vmatprep.subr.mxu0 0.0
  %689 = vmatpush1.msra.mxu0 0.0
  %690 = vmatprep.subr.mxu0 0.0
  %691 = vmatpush1.msra.mxu0 0.0
  %692 = vmatprep.subr.mxu0 0.0
  %693 = vmatpush1.msra.mxu0 0.0
  %694 = vmatprep.subr.mxu0 0.0
  %695 = vmatpush1.msra.mxu0 0.0
  %696 = vmatprep.subr.mxu0 0.0
  %697 = vmatpush1.msra.mxu0 0.0
  %698 = vmatprep.subr.mxu0 0.0
  %699 = vmatpush1.msra.mxu0 0.0
  %700 = vmatprep.subr.mxu0 0.0
  %701 = vmatpush1.msra.mxu0 0.0
  %702 = vmatprep.subr.mxu0 0.0
  %703 = vmatpush1.msra.mxu0 0.0
  %704 = vmatprep.subr.mxu0 0.0
  %705 = vmatpush1.msra.mxu0 0.0
  %706 = vmatprep.subr.mxu0 0.0
  %707 = vmatpush1.msra.mxu0 0.0
  %708 = vmatprep.subr.mxu0 0.0
  %709 = vmatpush1.msra.mxu0 0.0
  %710 = vmatprep.subr.mxu0 0.0
  %711 = vmatpush1.msra.mxu0 0.0
  %712 = vmatprep.subr.mxu0 0.0
  %713 = vmatpush1.msra.mxu0 0.0
  %714 = vmatprep.subr.mxu0 0.0
  %715 = vmatpush1.msra.mxu0 0.0
  %716 = vmatprep.subr.mxu0 0.0
  %717 = vmatpush1.msra.mxu0 0.0
  %718 = vmatprep.subr.mxu0 0.0
  %719 = vmatpush1.msra.mxu0 0.0
  %720 = vmatprep.subr.mxu0 0.0
  %721 = vmatpush1.msra.mxu0 0.0
  %722 = vmatprep.mubr.f32.mxu0 0.0
  %723 = vmatmul.mubr.f32.gmra.mrb[0].mxu0 %v653
  %v724 = vpop.f32.mrb[0].mxu0
  %v725 = vadd.f32 0.0, %v724
  %v726 = vpop.f32.mrb[0].mxu0
  %727 = vmatprep.mubr.f32.mxu0 0.0
  %728 = vmatmul.mubr.f32.gmra.mrb[0].mxu0 %v656
  %v729 = vpop.f32.mrb[0].mxu0
  %v730 = vadd.f32 0.0, %v729
  %v731 = vpop.f32.mrb[0].mxu0
  %732 = vdwg.mxu0
  %vm733 = vcmask 64512
  %v735 = vsel %vm733, %v158, 0
  %v738 = vsel %vm733, %v163, 0
  %v741 = vsel %vm733, %v239, 0
  %v744 = vsel %vm733, %v244, 0
  %v747 = vsel %vm733, %v320, 0
  %v750 = vsel %vm733, %v325, 0
  %v753 = vsel %vm733, %v401, 0
  %v756 = vsel %vm733, %v406, 0
  %v759 = vsel %vm733, %v482, 0
  %v762 = vsel %vm733, %v487, 0
  %v765 = vsel %vm733, %v563, 0
  %v768 = vsel %vm733, %v568, 0
  %v771 = vsel %vm733, %v644, 0
  %v774 = vsel %vm733, %v649, 0
  %v777 = vsel %vm733, %v725, 0
  %v780 = vsel %vm733, %v730, 0
  %782 = vmatprep.subr.mxu0 0.0
  %783 = vmatpush1.msra.mxu0 %v73
  %784 = vmatprep.subr.mxu0 0.0
  %785 = vmatpush1.msra.mxu0 0.0
  %786 = vmatprep.subr.mxu0 0.0
  %787 = vmatpush1.msra.mxu0 0.0
  %788 = vmatprep.subr.mxu0 0.0
  %789 = vmatpush1.msra.mxu0 0.0
  %790 = vmatprep.subr.mxu0 0.0
  %791 = vmatpush1.msra.mxu0 0.0
  %792 = vmatprep.subr.mxu0 0.0
  %793 = vmatpush1.msra.mxu0 0.0
  %794 = vmatprep.subr.mxu0 0.0
  %795 = vmatpush1.msra.mxu0 0.0
  %796 = vmatprep.subr.mxu0 0.0
  %797 = vmatpush1.msra.mxu0 0.0
  %798 = vmatprep.subr.mxu0 0.0
  %799 = vmatpush1.msra.mxu0 0.0
  %800 = vmatprep.subr.mxu0 0.0
  %801 = vmatpush1.msra.mxu0 0.0
  %802 = vmatprep.subr.mxu0 0.0
  %803 = vmatpush1.msra.mxu0 0.0
  %804 = vmatprep.subr.mxu0 0.0
  %805 = vmatpush1.msra.mxu0 0.0
  %806 = vmatprep.subr.mxu0 0.0
  %807 = vmatpush1.msra.mxu0 0.0
  %808 = vmatprep.subr.mxu0 0.0
  %809 = vmatpush1.msra.mxu0 0.0
  %810 = vmatprep.subr.mxu0 0.0
  %811 = vmatpush1.msra.mxu0 0.0
  %812 = vmatprep.subr.mxu0 0.0
  %813 = vmatpush1.msra.mxu0 0.0
  %814 = vmatprep.subr.mxu0 0.0
  %815 = vmatpush1.msra.mxu0 0.0
  %816 = vmatprep.subr.mxu0 0.0
  %817 = vmatpush1.msra.mxu0 0.0
  %818 = vmatprep.subr.mxu0 0.0
  %819 = vmatpush1.msra.mxu0 0.0
  %820 = vmatprep.subr.mxu0 0.0
  %821 = vmatpush1.msra.mxu0 0.0
  %822 = vmatprep.subr.mxu0 0.0
  %823 = vmatpush1.msra.mxu0 0.0
  %824 = vmatprep.subr.mxu0 0.0
  %825 = vmatpush1.msra.mxu0 0.0
  %826 = vmatprep.subr.mxu0 0.0
  %827 = vmatpush1.msra.mxu0 0.0
  %828 = vmatprep.subr.mxu0 0.0
  %829 = vmatpush1.msra.mxu0 0.0
  %830 = vmatprep.subr.mxu0 0.0
  %831 = vmatpush1.msra.mxu0 0.0
  %832 = vmatprep.subr.mxu0 0.0
  %833 = vmatpush1.msra.mxu0 0.0
  %834 = vmatprep.subr.mxu0 0.0
  %835 = vmatpush1.msra.mxu0 0.0
  %836 = vmatprep.subr.mxu0 0.0
  %837 = vmatpush1.msra.mxu0 0.0
  %838 = vmatprep.subr.mxu0 0.0
  %839 = vmatpush1.msra.mxu0 0.0
  %840 = vmatprep.subr.mxu0 0.0
  %841 = vmatpush1.msra.mxu0 0.0
  %842 = vmatprep.subr.mxu0 0.0
  %843 = vmatpush1.msra.mxu0 0.0
  %844 = vmatprep.subr.mxu0 0.0
  %845 = vmatpush1.msra.mxu0 0.0
  %846 = vmatprep.mubr.f32.mxu0 0.0
  %847 = vmatmul.mubr.f32.gmra.mrb[0].mxu0 %v735
  %v848 = vpop.f32.mrb[0].mxu0
  %v849 = vadd.f32 0.0, %v848
  %v850 = vpop.f32.mrb[0].mxu0
  %851 = vmatprep.mubr.f32.mxu0 0.0
  %852 = vmatmul.mubr.f32.gmra.mrb[0].mxu0 %v738
  %v853 = vpop.f32.mrb[0].mxu0
  %v854 = vadd.f32 0.0, %v853
  %v855 = vpop.f32.mrb[0].mxu0
  %856 = vmatprep.mubr.f32.mxu0 0.0
  %857 = vmatmul.mubr.f32.gmra.mrb[0].mxu0 %v741
  %v858 = vpop.f32.mrb[0].mxu0
  %v859 = vadd.f32 0.0, %v858
  %v860 = vpop.f32.mrb[0].mxu0
  %861 = vmatprep.mubr.f32.mxu0 0.0
  %862 = vmatmul.mubr.f32.gmra.mrb[0].mxu0 %v744
  %v863 = vpop.f32.mrb[0].mxu0
  %v864 = vadd.f32 0.0, %v863
  %v865 = vpop.f32.mrb[0].mxu0
  %866 = vmatprep.mubr.f32.mxu0 0.0
  %867 = vmatmul.mubr.f32.gmra.mrb[0].mxu0 %v747
  %v868 = vpop.f32.mrb[0].mxu0
  %v869 = vadd.f32 0.0, %v868
  %v870 = vpop.f32.mrb[0].mxu0
  %871 = vmatprep.mubr.f32.mxu0 0.0
  %872 = vmatmul.mubr.f32.gmra.mrb[0].mxu0 %v750
  %v873 = vpop.f32.mrb[0].mxu0
  %v874 = vadd.f32 0.0, %v873
  %v875 = vpop.f32.mrb[0].mxu0
  %876 = vmatprep.mubr.f32.mxu0 0.0
  %877 = vmatmul.mubr.f32.gmra.mrb[0].mxu0 %v753
  %v878 = vpop.f32.mrb[0].mxu0
  %v879 = vadd.f32 0.0, %v878
  %v880 = vpop.f32.mrb[0].mxu0
  %881 = vmatprep.mubr.f32.mxu0 0.0
  %882 = vmatmul.mubr.f32.gmra.mrb[0].mxu0 %v756
  %v883 = vpop.f32.mrb[0].mxu0
  %v884 = vadd.f32 0.0, %v883
  %v885 = vpop.f32.mrb[0].mxu0
  %886 = vmatprep.mubr.f32.mxu0 0.0
  %887 = vmatmul.mubr.f32.gmra.mrb[0].mxu0 %v759
  %v888 = vpop.f32.mrb[0].mxu0
  %v889 = vadd.f32 0.0, %v888
  %v890 = vpop.f32.mrb[0].mxu0
  %891 = vmatprep.mubr.f32.mxu0 0.0
  %892 = vmatmul.mubr.f32.gmra.mrb[0].mxu0 %v762
  %v893 = vpop.f32.mrb[0].mxu0
  %v894 = vadd.f32 0.0, %v893
  %v895 = vpop.f32.mrb[0].mxu0
  %896 = vmatprep.mubr.f32.mxu0 0.0
  %897 = vmatmul.mubr.f32.gmra.mrb[0].mxu0 %v765
  %v898 = vpop.f32.mrb[0].mxu0
  %v899 = vadd.f32 0.0, %v898
  %v900 = vpop.f32.mrb[0].mxu0
  %901 = vmatprep.mubr.f32.mxu0 0.0
  %902 = vmatmul.mubr.f32.gmra.mrb[0].mxu0 %v768
  %v903 = vpop.f32.mrb[0].mxu0
  %v904 = vadd.f32 0.0, %v903
  %v905 = vpop.f32.mrb[0].mxu0
  %906 = vmatprep.mubr.f32.mxu0 0.0
  %907 = vmatmul.mubr.f32.gmra.mrb[0].mxu0 %v771
  %v908 = vpop.f32.mrb[0].mxu0
  %v909 = vadd.f32 0.0, %v908
  %v910 = vpop.f32.mrb[0].mxu0
  %911 = vmatprep.mubr.f32.mxu0 0.0
  %912 = vmatmul.mubr.f32.gmra.mrb[0].mxu0 %v774
  %v913 = vpop.f32.mrb[0].mxu0
  %v914 = vadd.f32 0.0, %v913
  %v915 = vpop.f32.mrb[0].mxu0
  %916 = vmatprep.mubr.f32.mxu0 0.0
  %917 = vmatmul.mubr.f32.gmra.mrb[0].mxu0 %v777
  %v918 = vpop.f32.mrb[0].mxu0
  %v919 = vadd.f32 0.0, %v918
  %v920 = vpop.f32.mrb[0].mxu0
  %921 = vmatprep.mubr.f32.mxu0 0.0
  %922 = vmatmul.mubr.f32.gmra.mrb[0].mxu0 %v780
  %v923 = vpop.f32.mrb[0].mxu0
  %v924 = vadd.f32 0.0, %v923
  %v925 = vpop.f32.mrb[0].mxu0
  %926 = vdwg.mxu0
  %v928 = vsel %vm733, %v56, 0
  %v931 = vsel %vm733, %v57, 0
  %v934 = vsel %vm733, %v58, 0
  %v937 = vsel %vm733, %v59, 0
  %v940 = vsel %vm733, %v60, 0
  %v943 = vsel %vm733, %v61, 0
  %v946 = vsel %vm733, %v62, 0
  %v949 = vsel %vm733, %v63, 0
  %v952 = vsel %vm733, %v64, 0
  %v955 = vsel %vm733, %v65, 0
  %v958 = vsel %vm733, %v66, 0
  %v961 = vsel %vm733, %v67, 0
  %v964 = vsel %vm733, %v68, 0
  %v967 = vsel %vm733, %v69, 0
  %v970 = vsel %vm733, %v70, 0
  %v973 = vsel %vm733, %v71, 0
  %975 = vmatprep.subr.mxu0 0.0
  %976 = vmatpush1.msra.mxu0 %v72
  %977 = vmatprep.subr.mxu0 0.0
  %978 = vmatpush1.msra.mxu0 0.0
  %979 = vmatprep.subr.mxu0 0.0
  %980 = vmatpush1.msra.mxu0 0.0
  %981 = vmatprep.subr.mxu0 0.0
  %982 = vmatpush1.msra.mxu0 0.0
  %983 = vmatprep.subr.mxu0 0.0
  %984 = vmatpush1.msra.mxu0 0.0
  %985 = vmatprep.subr.mxu0 0.0
  %986 = vmatpush1.msra.mxu0 0.0
  %987 = vmatprep.subr.mxu0 0.0
  %988 = vmatpush1.msra.mxu0 0.0
  %989 = vmatprep.subr.mxu0 0.0
  %990 = vmatpush1.msra.mxu0 0.0
  %991 = vmatprep.subr.mxu0 0.0
  %992 = vmatpush1.msra.mxu0 0.0
  %993 = vmatprep.subr.mxu0 0.0
  %994 = vmatpush1.msra.mxu0 0.0
  %995 = vmatprep.subr.mxu0 0.0
  %996 = vmatpush1.msra.mxu0 0.0
  %997 = vmatprep.subr.mxu0 0.0
  %998 = vmatpush1.msra.mxu0 0.0
  %999 = vmatprep.subr.mxu0 0.0
  %1000 = vmatpush1.msra.mxu0 0.0
  %1001 = vmatprep.subr.mxu0 0.0
  %1002 = vmatpush1.msra.mxu0 0.0
  %1003 = vmatprep.subr.mxu0 0.0
  %1004 = vmatpush1.msra.mxu0 0.0
  %1005 = vmatprep.subr.mxu0 0.0
  %1006 = vmatpush1.msra.mxu0 0.0
  %1007 = vmatprep.subr.mxu0 0.0
  %1008 = vmatpush1.msra.mxu0 0.0
  %1009 = vmatprep.subr.mxu0 0.0
  %1010 = vmatpush1.msra.mxu0 0.0
  %1011 = vmatprep.subr.mxu0 0.0
  %1012 = vmatpush1.msra.mxu0 0.0
  %1013 = vmatprep.subr.mxu0 0.0
  %1014 = vmatpush1.msra.mxu0 0.0
  %1015 = vmatprep.subr.mxu0 0.0
  %1016 = vmatpush1.msra.mxu0 0.0
  %1017 = vmatprep.subr.mxu0 0.0
  %1018 = vmatpush1.msra.mxu0 0.0
  %1019 = vmatprep.subr.mxu0 0.0
  %1020 = vmatpush1.msra.mxu0 0.0
  %1021 = vmatprep.subr.mxu0 0.0
  %1022 = vmatpush1.msra.mxu0 0.0
  %1023 = vmatprep.subr.mxu0 0.0
  %1024 = vmatpush1.msra.mxu0 0.0
  %1025 = vmatprep.subr.mxu0 0.0
  %1026 = vmatpush1.msra.mxu0 0.0
  %1027 = vmatprep.subr.mxu0 0.0
  %1028 = vmatpush1.msra.mxu0 0.0
  %1029 = vmatprep.subr.mxu0 0.0
  %1030 = vmatpush1.msra.mxu0 0.0
  %1031 = vmatprep.subr.mxu0 0.0
  %1032 = vmatpush1.msra.mxu0 0.0
  %1033 = vmatprep.subr.mxu0 0.0
  %1034 = vmatpush1.msra.mxu0 0.0
  %1035 = vmatprep.subr.mxu0 0.0
  %1036 = vmatpush1.msra.mxu0 0.0
  %1037 = vmatprep.subr.mxu0 0.0
  %1038 = vmatpush1.msra.mxu0 0.0
  %1039 = vmatprep.mubr.f32.mxu0 0.0
  %1040 = vmatmul.mubr.f32.gmra.mrb[0].mxu0 %v928
  %v1041 = vpop.f32.mrb[0].mxu0
  %v1042 = vadd.f32 %v849, %v1041
  %v1043 = vpop.f32.mrb[0].mxu0
  %1044 = vmatprep.mubr.f32.mxu0 0.0
  %1045 = vmatmul.mubr.f32.gmra.mrb[0].mxu0 %v931
  %v1046 = vpop.f32.mrb[0].mxu0
  %v1047 = vadd.f32 %v854, %v1046
  %v1048 = vpop.f32.mrb[0].mxu0
  %1049 = vmatprep.mubr.f32.mxu0 0.0
  %1050 = vmatmul.mubr.f32.gmra.mrb[0].mxu0 %v934
  %v1051 = vpop.f32.mrb[0].mxu0
  %v1052 = vadd.f32 %v859, %v1051
  %v1053 = vpop.f32.mrb[0].mxu0
  %1054 = vmatprep.mubr.f32.mxu0 0.0
  %1055 = vmatmul.mubr.f32.gmra.mrb[0].mxu0 %v937
  %v1056 = vpop.f32.mrb[0].mxu0
  %v1057 = vadd.f32 %v864, %v1056
  %v1058 = vpop.f32.mrb[0].mxu0
  %1059 = vmatprep.mubr.f32.mxu0 0.0
  %1060 = vmatmul.mubr.f32.gmra.mrb[0].mxu0 %v940
  %v1061 = vpop.f32.mrb[0].mxu0
  %v1062 = vadd.f32 %v869, %v1061
  %v1063 = vpop.f32.mrb[0].mxu0
  %1064 = vmatprep.mubr.f32.mxu0 0.0
  %1065 = vmatmul.mubr.f32.gmra.mrb[0].mxu0 %v943
  %v1066 = vpop.f32.mrb[0].mxu0
  %v1067 = vadd.f32 %v874, %v1066
  %v1068 = vpop.f32.mrb[0].mxu0
  %1069 = vmatprep.mubr.f32.mxu0 0.0
  %1070 = vmatmul.mubr.f32.gmra.mrb[0].mxu0 %v946
  %v1071 = vpop.f32.mrb[0].mxu0
  %v1072 = vadd.f32 %v879, %v1071
  %v1073 = vpop.f32.mrb[0].mxu0
  %1074 = vmatprep.mubr.f32.mxu0 0.0
  %1075 = vmatmul.mubr.f32.gmra.mrb[0].mxu0 %v949
  %v1076 = vpop.f32.mrb[0].mxu0
  %v1077 = vadd.f32 %v884, %v1076
  %v1078 = vpop.f32.mrb[0].mxu0
  %1079 = vmatprep.mubr.f32.mxu0 0.0
  %1080 = vmatmul.mubr.f32.gmra.mrb[0].mxu0 %v952
  %v1081 = vpop.f32.mrb[0].mxu0
  %v1082 = vadd.f32 %v889, %v1081
  %v1083 = vpop.f32.mrb[0].mxu0
  %1084 = vmatprep.mubr.f32.mxu0 0.0
  %1085 = vmatmul.mubr.f32.gmra.mrb[0].mxu0 %v955
  %v1086 = vpop.f32.mrb[0].mxu0
  %v1087 = vadd.f32 %v894, %v1086
  %v1088 = vpop.f32.mrb[0].mxu0
  %1089 = vmatprep.mubr.f32.mxu0 0.0
  %1090 = vmatmul.mubr.f32.gmra.mrb[0].mxu0 %v958
  %v1091 = vpop.f32.mrb[0].mxu0
  %v1092 = vadd.f32 %v899, %v1091
  %v1093 = vpop.f32.mrb[0].mxu0
  %1094 = vmatprep.mubr.f32.mxu0 0.0
  %1095 = vmatmul.mubr.f32.gmra.mrb[0].mxu0 %v961
  %v1096 = vpop.f32.mrb[0].mxu0
  %v1097 = vadd.f32 %v904, %v1096
  %v1098 = vpop.f32.mrb[0].mxu0
  %1099 = vmatprep.mubr.f32.mxu0 0.0
  %1100 = vmatmul.mubr.f32.gmra.mrb[0].mxu0 %v964
  %v1101 = vpop.f32.mrb[0].mxu0
  %v1102 = vadd.f32 %v909, %v1101
  %v1103 = vpop.f32.mrb[0].mxu0
  %1104 = vmatprep.mubr.f32.mxu0 0.0
  %1105 = vmatmul.mubr.f32.gmra.mrb[0].mxu0 %v967
  %v1106 = vpop.f32.mrb[0].mxu0
  %v1107 = vadd.f32 %v914, %v1106
  %v1108 = vpop.f32.mrb[0].mxu0
  %1109 = vmatprep.mubr.f32.mxu0 0.0
  %1110 = vmatmul.mubr.f32.gmra.mrb[0].mxu0 %v970
  %v1111 = vpop.f32.mrb[0].mxu0
  %v1112 = vadd.f32 %v919, %v1111
  %v1113 = vpop.f32.mrb[0].mxu0
  %1114 = vmatprep.mubr.f32.mxu0 0.0
  %1115 = vmatmul.mubr.f32.gmra.mrb[0].mxu0 %v973
  %v1116 = vpop.f32.mrb[0].mxu0
  %v1117 = vadd.f32 %v924, %v1116
  %v1118 = vpop.f32.mrb[0].mxu0
  %1119 = vdwg.mxu0
  %v1121 = vlaneseq
  %v1122 = vshrl.u32 %v1121, 7
  %v1123 = vsub.s32 0, %v1122
  %v1124 = vrot.slane %v74, %v1123
  %v1126 = vadd.f32 %v1042, %v1124
  %v1127 = vadd.f32 %v1047, %v1124
  %v1128 = vadd.f32 %v1052, %v1124
  %v1129 = vadd.f32 %v1057, %v1124
  %v1130 = vadd.f32 %v1062, %v1124
  %v1131 = vadd.f32 %v1067, %v1124
  %v1132 = vadd.f32 %v1072, %v1124
  %v1133 = vadd.f32 %v1077, %v1124
  %v1134 = vadd.f32 %v1082, %v1124
  %v1135 = vadd.f32 %v1087, %v1124
  %v1136 = vadd.f32 %v1092, %v1124
  %v1137 = vadd.f32 %v1097, %v1124
  %v1138 = vadd.f32 %v1102, %v1124
  %v1139 = vadd.f32 %v1107, %v1124
  %v1140 = vadd.f32 %v1112, %v1124
  %v1141 = vadd.f32 %v1117, %v1124
  %v1142 = vmax.f32 %v1126, 0.0
  %v1143 = vmax.f32 %v1127, 0.0
  %v1144 = vmax.f32 %v1128, 0.0
  %v1145 = vmax.f32 %v1129, 0.0
  %v1146 = vmax.f32 %v1130, 0.0
  %v1147 = vmax.f32 %v1131, 0.0
  %v1148 = vmax.f32 %v1132, 0.0
  %v1149 = vmax.f32 %v1133, 0.0
  %v1150 = vmax.f32 %v1134, 0.0
  %v1151 = vmax.f32 %v1135, 0.0
  %v1152 = vmax.f32 %v1136, 0.0
  %v1153 = vmax.f32 %v1137, 0.0
  %v1154 = vmax.f32 %v1138, 0.0
  %v1155 = vmax.f32 %v1139, 0.0
  %v1156 = vmax.f32 %v1140, 0.0
  %v1157 = vmax.f32 %v1141, 0.0
  %v1159 = vsel %vm84, %v48, 0
  %1161 = vmatprep.subr.mxu0 0.0
  %1162 = vmatpush1.msra.mxu0 %v1142
  %1163 = vmatprep.subr.mxu0 0.0
  %1164 = vmatpush1.msra.mxu0 %v1143
  %1165 = vmatprep.subr.mxu0 0.0
  %1166 = vmatpush1.msra.mxu0 0.0
  %1167 = vmatprep.subr.mxu0 0.0
  %1168 = vmatpush1.msra.mxu0 0.0
  %1169 = vmatprep.subr.mxu0 0.0
  %1170 = vmatpush1.msra.mxu0 0.0
  %1171 = vmatprep.subr.mxu0 0.0
  %1172 = vmatpush1.msra.mxu0 0.0
  %1173 = vmatprep.subr.mxu0 0.0
  %1174 = vmatpush1.msra.mxu0 0.0
  %1175 = vmatprep.subr.mxu0 0.0
  %1176 = vmatpush1.msra.mxu0 0.0
  %1177 = vmatprep.subr.mxu0 0.0
  %1178 = vmatpush1.msra.mxu0 0.0
  %1179 = vmatprep.subr.mxu0 0.0
  %1180 = vmatpush1.msra.mxu0 0.0
  %1181 = vmatprep.subr.mxu0 0.0
  %1182 = vmatpush1.msra.mxu0 0.0
  %1183 = vmatprep.subr.mxu0 0.0
  %1184 = vmatpush1.msra.mxu0 0.0
  %1185 = vmatprep.subr.mxu0 0.0
  %1186 = vmatpush1.msra.mxu0 0.0
  %1187 = vmatprep.subr.mxu0 0.0
  %1188 = vmatpush1.msra.mxu0 0.0
  %1189 = vmatprep.subr.mxu0 0.0
  %1190 = vmatpush1.msra.mxu0 0.0
  %1191 = vmatprep.subr.mxu0 0.0
  %1192 = vmatpush1.msra.mxu0 0.0
  %1193 = vmatprep.subr.mxu0 0.0
  %1194 = vmatpush1.msra.mxu0 0.0
  %1195 = vmatprep.subr.mxu0 0.0
  %1196 = vmatpush1.msra.mxu0 0.0
  %1197 = vmatprep.subr.mxu0 0.0
  %1198 = vmatpush1.msra.mxu0 0.0
  %1199 = vmatprep.subr.mxu0 0.0
  %1200 = vmatpush1.msra.mxu0 0.0
  %1201 = vmatprep.subr.mxu0 0.0
  %1202 = vmatpush1.msra.mxu0 0.0
  %1203 = vmatprep.subr.mxu0 0.0
  %1204 = vmatpush1.msra.mxu0 0.0
  %1205 = vmatprep.subr.mxu0 0.0
  %1206 = vmatpush1.msra.mxu0 0.0
  %1207 = vmatprep.subr.mxu0 0.0
  %1208 = vmatpush1.msra.mxu0 0.0
  %1209 = vmatprep.subr.mxu0 0.0
  %1210 = vmatpush1.msra.mxu0 0.0
  %1211 = vmatprep.subr.mxu0 0.0
  %1212 = vmatpush1.msra.mxu0 0.0
  %1213 = vmatprep.subr.mxu0 0.0
  %1214 = vmatpush1.msra.mxu0 0.0
  %1215 = vmatprep.subr.mxu0 0.0
  %1216 = vmatpush1.msra.mxu0 0.0
  %1217 = vmatprep.subr.mxu0 0.0
  %1218 = vmatpush1.msra.mxu0 0.0
  %1219 = vmatprep.subr.mxu0 0.0
  %1220 = vmatpush1.msra.mxu0 0.0
  %1221 = vmatprep.subr.mxu0 0.0
  %1222 = vmatpush1.msra.mxu0 0.0
  %1223 = vmatprep.subr.mxu0 0.0
  %1224 = vmatpush1.msra.mxu0 0.0
  %1225 = vmatprep.mubr.f32.mxu0 0.0
  %1226 = vmatmul.mubr.f32.gmra.mrb[0].mxu0 %v1159
  %v1227 = vpop.f32.mrb[0].mxu0
  %v1228 = vadd.f32 0.0, %v1227
  %v1229 = vpop.f32.mrb[0].mxu0
  %1230 = vdwg.mxu0
  %v1232 = vsel %vm84, %v49, 0
  %1234 = vmatprep.subr.mxu0 0.0
  %1235 = vmatpush1.msra.mxu0 %v1144
  %1236 = vmatprep.subr.mxu0 0.0
  %1237 = vmatpush1.msra.mxu0 %v1145
  %1238 = vmatprep.subr.mxu0 0.0
  %1239 = vmatpush1.msra.mxu0 0.0
  %1240 = vmatprep.subr.mxu0 0.0
  %1241 = vmatpush1.msra.mxu0 0.0
  %1242 = vmatprep.subr.mxu0 0.0
  %1243 = vmatpush1.msra.mxu0 0.0
  %1244 = vmatprep.subr.mxu0 0.0
  %1245 = vmatpush1.msra.mxu0 0.0
  %1246 = vmatprep.subr.mxu0 0.0
  %1247 = vmatpush1.msra.mxu0 0.0
  %1248 = vmatprep.subr.mxu0 0.0
  %1249 = vmatpush1.msra.mxu0 0.0
  %1250 = vmatprep.subr.mxu0 0.0
  %1251 = vmatpush1.msra.mxu0 0.0
  %1252 = vmatprep.subr.mxu0 0.0
  %1253 = vmatpush1.msra.mxu0 0.0
  %1254 = vmatprep.subr.mxu0 0.0
  %1255 = vmatpush1.msra.mxu0 0.0
  %1256 = vmatprep.subr.mxu0 0.0
  %1257 = vmatpush1.msra.mxu0 0.0
  %1258 = vmatprep.subr.mxu0 0.0
  %1259 = vmatpush1.msra.mxu0 0.0
  %1260 = vmatprep.subr.mxu0 0.0
  %1261 = vmatpush1.msra.mxu0 0.0
  %1262 = vmatprep.subr.mxu0 0.0
  %1263 = vmatpush1.msra.mxu0 0.0
  %1264 = vmatprep.subr.mxu0 0.0
  %1265 = vmatpush1.msra.mxu0 0.0
  %1266 = vmatprep.subr.mxu0 0.0
  %1267 = vmatpush1.msra.mxu0 0.0
  %1268 = vmatprep.subr.mxu0 0.0
  %1269 = vmatpush1.msra.mxu0 0.0
  %1270 = vmatprep.subr.mxu0 0.0
  %1271 = vmatpush1.msra.mxu0 0.0
  %1272 = vmatprep.subr.mxu0 0.0
  %1273 = vmatpush1.msra.mxu0 0.0
  %1274 = vmatprep.subr.mxu0 0.0
  %1275 = vmatpush1.msra.mxu0 0.0
  %1276 = vmatprep.subr.mxu0 0.0
  %1277 = vmatpush1.msra.mxu0 0.0
  %1278 = vmatprep.subr.mxu0 0.0
  %1279 = vmatpush1.msra.mxu0 0.0
  %1280 = vmatprep.subr.mxu0 0.0
  %1281 = vmatpush1.msra.mxu0 0.0
  %1282 = vmatprep.subr.mxu0 0.0
  %1283 = vmatpush1.msra.mxu0 0.0
  %1284 = vmatprep.subr.mxu0 0.0
  %1285 = vmatpush1.msra.mxu0 0.0
  %1286 = vmatprep.subr.mxu0 0.0
  %1287 = vmatpush1.msra.mxu0 0.0
  %1288 = vmatprep.subr.mxu0 0.0
  %1289 = vmatpush1.msra.mxu0 0.0
  %1290 = vmatprep.subr.mxu0 0.0
  %1291 = vmatpush1.msra.mxu0 0.0
  %1292 = vmatprep.subr.mxu0 0.0
  %1293 = vmatpush1.msra.mxu0 0.0
  %1294 = vmatprep.subr.mxu0 0.0
  %1295 = vmatpush1.msra.mxu0 0.0
  %1296 = vmatprep.subr.mxu0 0.0
  %1297 = vmatpush1.msra.mxu0 0.0
  %1298 = vmatprep.mubr.f32.mxu0 0.0
  %1299 = vmatmul.mubr.f32.gmra.mrb[0].mxu0 %v1232
  %v1300 = vpop.f32.mrb[0].mxu0
  %v1301 = vadd.f32 0.0, %v1300
  %v1302 = vpop.f32.mrb[0].mxu0
  %1303 = vdwg.mxu0
  %v1305 = vsel %vm84, %v50, 0
  %1307 = vmatprep.subr.mxu0 0.0
  %1308 = vmatpush1.msra.mxu0 %v1146
  %1309 = vmatprep.subr.mxu0 0.0
  %1310 = vmatpush1.msra.mxu0 %v1147
  %1311 = vmatprep.subr.mxu0 0.0
  %1312 = vmatpush1.msra.mxu0 0.0
  %1313 = vmatprep.subr.mxu0 0.0
  %1314 = vmatpush1.msra.mxu0 0.0
  %1315 = vmatprep.subr.mxu0 0.0
  %1316 = vmatpush1.msra.mxu0 0.0
  %1317 = vmatprep.subr.mxu0 0.0
  %1318 = vmatpush1.msra.mxu0 0.0
  %1319 = vmatprep.subr.mxu0 0.0
  %1320 = vmatpush1.msra.mxu0 0.0
  %1321 = vmatprep.subr.mxu0 0.0
  %1322 = vmatpush1.msra.mxu0 0.0
  %1323 = vmatprep.subr.mxu0 0.0
  %1324 = vmatpush1.msra.mxu0 0.0
  %1325 = vmatprep.subr.mxu0 0.0
  %1326 = vmatpush1.msra.mxu0 0.0
  %1327 = vmatprep.subr.mxu0 0.0
  %1328 = vmatpush1.msra.mxu0 0.0
  %1329 = vmatprep.subr.mxu0 0.0
  %1330 = vmatpush1.msra.mxu0 0.0
  %1331 = vmatprep.subr.mxu0 0.0
  %1332 = vmatpush1.msra.mxu0 0.0
  %1333 = vmatprep.subr.mxu0 0.0
  %1334 = vmatpush1.msra.mxu0 0.0
  %1335 = vmatprep.subr.mxu0 0.0
  %1336 = vmatpush1.msra.mxu0 0.0
  %1337 = vmatprep.subr.mxu0 0.0
  %1338 = vmatpush1.msra.mxu0 0.0
  %1339 = vmatprep.subr.mxu0 0.0
  %1340 = vmatpush1.msra.mxu0 0.0
  %1341 = vmatprep.subr.mxu0 0.0
  %1342 = vmatpush1.msra.mxu0 0.0
  %1343 = vmatprep.subr.mxu0 0.0
  %1344 = vmatpush1.msra.mxu0 0.0
  %1345 = vmatprep.subr.mxu0 0.0
  %1346 = vmatpush1.msra.mxu0 0.0
  %1347 = vmatprep.subr.mxu0 0.0
  %1348 = vmatpush1.msra.mxu0 0.0
  %1349 = vmatprep.subr.mxu0 0.0
  %1350 = vmatpush1.msra.mxu0 0.0
  %1351 = vmatprep.subr.mxu0 0.0
  %1352 = vmatpush1.msra.mxu0 0.0
  %1353 = vmatprep.subr.mxu0 0.0
  %1354 = vmatpush1.msra.mxu0 0.0
  %1355 = vmatprep.subr.mxu0 0.0
  %1356 = vmatpush1.msra.mxu0 0.0
  %1357 = vmatprep.subr.mxu0 0.0
  %1358 = vmatpush1.msra.mxu0 0.0
  %1359 = vmatprep.subr.mxu0 0.0
  %1360 = vmatpush1.msra.mxu0 0.0
  %1361 = vmatprep.subr.mxu0 0.0
  %1362 = vmatpush1.msra.mxu0 0.0
  %1363 = vmatprep.subr.mxu0 0.0
  %1364 = vmatpush1.msra.mxu0 0.0
  %1365 = vmatprep.subr.mxu0 0.0
  %1366 = vmatpush1.msra.mxu0 0.0
  %1367 = vmatprep.subr.mxu0 0.0
  %1368 = vmatpush1.msra.mxu0 0.0
  %1369 = vmatprep.subr.mxu0 0.0
  %1370 = vmatpush1.msra.mxu0 0.0
  %1371 = vmatprep.mubr.f32.mxu0 0.0
  %1372 = vmatmul.mubr.f32.gmra.mrb[0].mxu0 %v1305
  %v1373 = vpop.f32.mrb[0].mxu0
  %v1374 = vadd.f32 0.0, %v1373
  %v1375 = vpop.f32.mrb[0].mxu0
  %1376 = vdwg.mxu0
  %v1378 = vsel %vm84, %v51, 0
  %1380 = vmatprep.subr.mxu0 0.0
  %1381 = vmatpush1.msra.mxu0 %v1148
  %1382 = vmatprep.subr.mxu0 0.0
  %1383 = vmatpush1.msra.mxu0 %v1149
  %1384 = vmatprep.subr.mxu0 0.0
  %1385 = vmatpush1.msra.mxu0 0.0
  %1386 = vmatprep.subr.mxu0 0.0
  %1387 = vmatpush1.msra.mxu0 0.0
  %1388 = vmatprep.subr.mxu0 0.0
  %1389 = vmatpush1.msra.mxu0 0.0
  %1390 = vmatprep.subr.mxu0 0.0
  %1391 = vmatpush1.msra.mxu0 0.0
  %1392 = vmatprep.subr.mxu0 0.0
  %1393 = vmatpush1.msra.mxu0 0.0
  %1394 = vmatprep.subr.mxu0 0.0
  %1395 = vmatpush1.msra.mxu0 0.0
  %1396 = vmatprep.subr.mxu0 0.0
  %1397 = vmatpush1.msra.mxu0 0.0
  %1398 = vmatprep.subr.mxu0 0.0
  %1399 = vmatpush1.msra.mxu0 0.0
  %1400 = vmatprep.subr.mxu0 0.0
  %1401 = vmatpush1.msra.mxu0 0.0
  %1402 = vmatprep.subr.mxu0 0.0
  %1403 = vmatpush1.msra.mxu0 0.0
  %1404 = vmatprep.subr.mxu0 0.0
  %1405 = vmatpush1.msra.mxu0 0.0
  %1406 = vmatprep.subr.mxu0 0.0
  %1407 = vmatpush1.msra.mxu0 0.0
  %1408 = vmatprep.subr.mxu0 0.0
  %1409 = vmatpush1.msra.mxu0 0.0
  %1410 = vmatprep.subr.mxu0 0.0
  %1411 = vmatpush1.msra.mxu0 0.0
  %1412 = vmatprep.subr.mxu0 0.0
  %1413 = vmatpush1.msra.mxu0 0.0
  %1414 = vmatprep.subr.mxu0 0.0
  %1415 = vmatpush1.msra.mxu0 0.0
  %1416 = vmatprep.subr.mxu0 0.0
  %1417 = vmatpush1.msra.mxu0 0.0
  %1418 = vmatprep.subr.mxu0 0.0
  %1419 = vmatpush1.msra.mxu0 0.0
  %1420 = vmatprep.subr.mxu0 0.0
  %1421 = vmatpush1.msra.mxu0 0.0
  %1422 = vmatprep.subr.mxu0 0.0
  %1423 = vmatpush1.msra.mxu0 0.0
  %1424 = vmatprep.subr.mxu0 0.0
  %1425 = vmatpush1.msra.mxu0 0.0
  %1426 = vmatprep.subr.mxu0 0.0
  %1427 = vmatpush1.msra.mxu0 0.0
  %1428 = vmatprep.subr.mxu0 0.0
  %1429 = vmatpush1.msra.mxu0 0.0
  %1430 = vmatprep.subr.mxu0 0.0
  %1431 = vmatpush1.msra.mxu0 0.0
  %1432 = vmatprep.subr.mxu0 0.0
  %1433 = vmatpush1.msra.mxu0 0.0
  %1434 = vmatprep.subr.mxu0 0.0
  %1435 = vmatpush1.msra.mxu0 0.0
  %1436 = vmatprep.subr.mxu0 0.0
  %1437 = vmatpush1.msra.mxu0 0.0
  %1438 = vmatprep.subr.mxu0 0.0
  %1439 = vmatpush1.msra.mxu0 0.0
  %1440 = vmatprep.subr.mxu0 0.0
  %1441 = vmatpush1.msra.mxu0 0.0
  %1442 = vmatprep.subr.mxu0 0.0
  %1443 = vmatpush1.msra.mxu0 0.0
  %1444 = vmatprep.mubr.f32.mxu0 0.0
  %1445 = vmatmul.mubr.f32.gmra.mrb[0].mxu0 %v1378
  %v1446 = vpop.f32.mrb[0].mxu0
  %v1447 = vadd.f32 0.0, %v1446
  %v1448 = vpop.f32.mrb[0].mxu0
  %1449 = vdwg.mxu0
  %v1451 = vsel %vm84, %v52, 0
  %1453 = vmatprep.subr.mxu0 0.0
  %1454 = vmatpush1.msra.mxu0 %v1150
  %1455 = vmatprep.subr.mxu0 0.0
  %1456 = vmatpush1.msra.mxu0 %v1151
  %1457 = vmatprep.subr.mxu0 0.0
  %1458 = vmatpush1.msra.mxu0 0.0
  %1459 = vmatprep.subr.mxu0 0.0
  %1460 = vmatpush1.msra.mxu0 0.0
  %1461 = vmatprep.subr.mxu0 0.0
  %1462 = vmatpush1.msra.mxu0 0.0
  %1463 = vmatprep.subr.mxu0 0.0
  %1464 = vmatpush1.msra.mxu0 0.0
  %1465 = vmatprep.subr.mxu0 0.0
  %1466 = vmatpush1.msra.mxu0 0.0
  %1467 = vmatprep.subr.mxu0 0.0
  %1468 = vmatpush1.msra.mxu0 0.0
  %1469 = vmatprep.subr.mxu0 0.0
  %1470 = vmatpush1.msra.mxu0 0.0
  %1471 = vmatprep.subr.mxu0 0.0
  %1472 = vmatpush1.msra.mxu0 0.0
  %1473 = vmatprep.subr.mxu0 0.0
  %1474 = vmatpush1.msra.mxu0 0.0
  %1475 = vmatprep.subr.mxu0 0.0
  %1476 = vmatpush1.msra.mxu0 0.0
  %1477 = vmatprep.subr.mxu0 0.0
  %1478 = vmatpush1.msra.mxu0 0.0
  %1479 = vmatprep.subr.mxu0 0.0
  %1480 = vmatpush1.msra.mxu0 0.0
  %1481 = vmatprep.subr.mxu0 0.0
  %1482 = vmatpush1.msra.mxu0 0.0
  %1483 = vmatprep.subr.mxu0 0.0
  %1484 = vmatpush1.msra.mxu0 0.0
  %1485 = vmatprep.subr.mxu0 0.0
  %1486 = vmatpush1.msra.mxu0 0.0
  %1487 = vmatprep.subr.mxu0 0.0
  %1488 = vmatpush1.msra.mxu0 0.0
  %1489 = vmatprep.subr.mxu0 0.0
  %1490 = vmatpush1.msra.mxu0 0.0
  %1491 = vmatprep.subr.mxu0 0.0
  %1492 = vmatpush1.msra.mxu0 0.0
  %1493 = vmatprep.subr.mxu0 0.0
  %1494 = vmatpush1.msra.mxu0 0.0
  %1495 = vmatprep.subr.mxu0 0.0
  %1496 = vmatpush1.msra.mxu0 0.0
  %1497 = vmatprep.subr.mxu0 0.0
  %1498 = vmatpush1.msra.mxu0 0.0
  %1499 = vmatprep.subr.mxu0 0.0
  %1500 = vmatpush1.msra.mxu0 0.0
  %1501 = vmatprep.subr.mxu0 0.0
  %1502 = vmatpush1.msra.mxu0 0.0
  %1503 = vmatprep.subr.mxu0 0.0
  %1504 = vmatpush1.msra.mxu0 0.0
  %1505 = vmatprep.subr.mxu0 0.0
  %1506 = vmatpush1.msra.mxu0 0.0
  %1507 = vmatprep.subr.mxu0 0.0
  %1508 = vmatpush1.msra.mxu0 0.0
  %1509 = vmatprep.subr.mxu0 0.0
  %1510 = vmatpush1.msra.mxu0 0.0
  %1511 = vmatprep.subr.mxu0 0.0
  %1512 = vmatpush1.msra.mxu0 0.0
  %1513 = vmatprep.subr.mxu0 0.0
  %1514 = vmatpush1.msra.mxu0 0.0
  %1515 = vmatprep.subr.mxu0 0.0
  %1516 = vmatpush1.msra.mxu0 0.0
  %1517 = vmatprep.mubr.f32.mxu0 0.0
  %1518 = vmatmul.mubr.f32.gmra.mrb[0].mxu0 %v1451
  %v1519 = vpop.f32.mrb[0].mxu0
  %v1520 = vadd.f32 0.0, %v1519
  %v1521 = vpop.f32.mrb[0].mxu0
  %1522 = vdwg.mxu0
  %v1524 = vsel %vm84, %v53, 0
  %1526 = vmatprep.subr.mxu0 0.0
  %1527 = vmatpush1.msra.mxu0 %v1152
  %1528 = vmatprep.subr.mxu0 0.0
  %1529 = vmatpush1.msra.mxu0 %v1153
  %1530 = vmatprep.subr.mxu0 0.0
  %1531 = vmatpush1.msra.mxu0 0.0
  %1532 = vmatprep.subr.mxu0 0.0
  %1533 = vmatpush1.msra.mxu0 0.0
  %1534 = vmatprep.subr.mxu0 0.0
  %1535 = vmatpush1.msra.mxu0 0.0
  %1536 = vmatprep.subr.mxu0 0.0
  %1537 = vmatpush1.msra.mxu0 0.0
  %1538 = vmatprep.subr.mxu0 0.0
  %1539 = vmatpush1.msra.mxu0 0.0
  %1540 = vmatprep.subr.mxu0 0.0
  %1541 = vmatpush1.msra.mxu0 0.0
  %1542 = vmatprep.subr.mxu0 0.0
  %1543 = vmatpush1.msra.mxu0 0.0
  %1544 = vmatprep.subr.mxu0 0.0
  %1545 = vmatpush1.msra.mxu0 0.0
  %1546 = vmatprep.subr.mxu0 0.0
  %1547 = vmatpush1.msra.mxu0 0.0
  %1548 = vmatprep.subr.mxu0 0.0
  %1549 = vmatpush1.msra.mxu0 0.0
  %1550 = vmatprep.subr.mxu0 0.0
  %1551 = vmatpush1.msra.mxu0 0.0
  %1552 = vmatprep.subr.mxu0 0.0
  %1553 = vmatpush1.msra.mxu0 0.0
  %1554 = vmatprep.subr.mxu0 0.0
  %1555 = vmatpush1.msra.mxu0 0.0
  %1556 = vmatprep.subr.mxu0 0.0
  %1557 = vmatpush1.msra.mxu0 0.0
  %1558 = vmatprep.subr.mxu0 0.0
  %1559 = vmatpush1.msra.mxu0 0.0
  %1560 = vmatprep.subr.mxu0 0.0
  %1561 = vmatpush1.msra.mxu0 0.0
  %1562 = vmatprep.subr.mxu0 0.0
  %1563 = vmatpush1.msra.mxu0 0.0
  %1564 = vmatprep.subr.mxu0 0.0
  %1565 = vmatpush1.msra.mxu0 0.0
  %1566 = vmatprep.subr.mxu0 0.0
  %1567 = vmatpush1.msra.mxu0 0.0
  %1568 = vmatprep.subr.mxu0 0.0
  %1569 = vmatpush1.msra.mxu0 0.0
  %1570 = vmatprep.subr.mxu0 0.0
  %1571 = vmatpush1.msra.mxu0 0.0
  %1572 = vmatprep.subr.mxu0 0.0
  %1573 = vmatpush1.msra.mxu0 0.0
  %1574 = vmatprep.subr.mxu0 0.0
  %1575 = vmatpush1.msra.mxu0 0.0
  %1576 = vmatprep.subr.mxu0 0.0
  %1577 = vmatpush1.msra.mxu0 0.0
  %1578 = vmatprep.subr.mxu0 0.0
  %1579 = vmatpush1.msra.mxu0 0.0
  %1580 = vmatprep.subr.mxu0 0.0
  %1581 = vmatpush1.msra.mxu0 0.0
  %1582 = vmatprep.subr.mxu0 0.0
  %1583 = vmatpush1.msra.mxu0 0.0
  %1584 = vmatprep.subr.mxu0 0.0
  %1585 = vmatpush1.msra.mxu0 0.0
  %1586 = vmatprep.subr.mxu0 0.0
  %1587 = vmatpush1.msra.mxu0 0.0
  %1588 = vmatprep.subr.mxu0 0.0
  %1589 = vmatpush1.msra.mxu0 0.0
  %1590 = vmatprep.mubr.f32.mxu0 0.0
  %1591 = vmatmul.mubr.f32.gmra.mrb[0].mxu0 %v1524
  %v1592 = vpop.f32.mrb[0].mxu0
  %v1593 = vadd.f32 0.0, %v1592
  %v1594 = vpop.f32.mrb[0].mxu0
  %1595 = vdwg.mxu0
  %v1597 = vsel %vm84, %v54, 0
  %1599 = vmatprep.subr.mxu0 0.0
  %1600 = vmatpush1.msra.mxu0 %v1154
  %1601 = vmatprep.subr.mxu0 0.0
  %1602 = vmatpush1.msra.mxu0 %v1155
  %1603 = vmatprep.subr.mxu0 0.0
  %1604 = vmatpush1.msra.mxu0 0.0
  %1605 = vmatprep.subr.mxu0 0.0
  %1606 = vmatpush1.msra.mxu0 0.0
  %1607 = vmatprep.subr.mxu0 0.0
  %1608 = vmatpush1.msra.mxu0 0.0
  %1609 = vmatprep.subr.mxu0 0.0
  %1610 = vmatpush1.msra.mxu0 0.0
  %1611 = vmatprep.subr.mxu0 0.0
  %1612 = vmatpush1.msra.mxu0 0.0
  %1613 = vmatprep.subr.mxu0 0.0
  %1614 = vmatpush1.msra.mxu0 0.0
  %1615 = vmatprep.subr.mxu0 0.0
  %1616 = vmatpush1.msra.mxu0 0.0
  %1617 = vmatprep.subr.mxu0 0.0
  %1618 = vmatpush1.msra.mxu0 0.0
  %1619 = vmatprep.subr.mxu0 0.0
  %1620 = vmatpush1.msra.mxu0 0.0
  %1621 = vmatprep.subr.mxu0 0.0
  %1622 = vmatpush1.msra.mxu0 0.0
  %1623 = vmatprep.subr.mxu0 0.0
  %1624 = vmatpush1.msra.mxu0 0.0
  %1625 = vmatprep.subr.mxu0 0.0
  %1626 = vmatpush1.msra.mxu0 0.0
  %1627 = vmatprep.subr.mxu0 0.0
  %1628 = vmatpush1.msra.mxu0 0.0
  %1629 = vmatprep.subr.mxu0 0.0
  %1630 = vmatpush1.msra.mxu0 0.0
  %1631 = vmatprep.subr.mxu0 0.0
  %1632 = vmatpush1.msra.mxu0 0.0
  %1633 = vmatprep.subr.mxu0 0.0
  %1634 = vmatpush1.msra.mxu0 0.0
  %1635 = vmatprep.subr.mxu0 0.0
  %1636 = vmatpush1.msra.mxu0 0.0
  %1637 = vmatprep.subr.mxu0 0.0
  %1638 = vmatpush1.msra.mxu0 0.0
  %1639 = vmatprep.subr.mxu0 0.0
  %1640 = vmatpush1.msra.mxu0 0.0
  %1641 = vmatprep.subr.mxu0 0.0
  %1642 = vmatpush1.msra.mxu0 0.0
  %1643 = vmatprep.subr.mxu0 0.0
  %1644 = vmatpush1.msra.mxu0 0.0
  %1645 = vmatprep.subr.mxu0 0.0
  %1646 = vmatpush1.msra.mxu0 0.0
  %1647 = vmatprep.subr.mxu0 0.0
  %1648 = vmatpush1.msra.mxu0 0.0
  %1649 = vmatprep.subr.mxu0 0.0
  %1650 = vmatpush1.msra.mxu0 0.0
  %1651 = vmatprep.subr.mxu0 0.0
  %1652 = vmatpush1.msra.mxu0 0.0
  %1653 = vmatprep.subr.mxu0 0.0
  %1654 = vmatpush1.msra.mxu0 0.0
  %1655 = vmatprep.subr.mxu0 0.0
  %1656 = vmatpush1.msra.mxu0 0.0
  %1657 = vmatprep.subr.mxu0 0.0
  %1658 = vmatpush1.msra.mxu0 0.0
  %1659 = vmatprep.subr.mxu0 0.0
  %1660 = vmatpush1.msra.mxu0 0.0
  %1661 = vmatprep.subr.mxu0 0.0
  %1662 = vmatpush1.msra.mxu0 0.0
  %1663 = vmatprep.mubr.f32.mxu0 0.0
  %1664 = vmatmul.mubr.f32.gmra.mrb[0].mxu0 %v1597
  %v1665 = vpop.f32.mrb[0].mxu0
  %v1666 = vadd.f32 0.0, %v1665
  %v1667 = vpop.f32.mrb[0].mxu0
  %1668 = vdwg.mxu0
  %v1670 = vsel %vm84, %v55, 0
  %1672 = vmatprep.subr.mxu0 0.0
  %1673 = vmatpush1.msra.mxu0 %v1156
  %1674 = vmatprep.subr.mxu0 0.0
  %1675 = vmatpush1.msra.mxu0 %v1157
  %1676 = vmatprep.subr.mxu0 0.0
  %1677 = vmatpush1.msra.mxu0 0.0
  %1678 = vmatprep.subr.mxu0 0.0
  %1679 = vmatpush1.msra.mxu0 0.0
  %1680 = vmatprep.subr.mxu0 0.0
  %1681 = vmatpush1.msra.mxu0 0.0
  %1682 = vmatprep.subr.mxu0 0.0
  %1683 = vmatpush1.msra.mxu0 0.0
  %1684 = vmatprep.subr.mxu0 0.0
  %1685 = vmatpush1.msra.mxu0 0.0
  %1686 = vmatprep.subr.mxu0 0.0
  %1687 = vmatpush1.msra.mxu0 0.0
  %1688 = vmatprep.subr.mxu0 0.0
  %1689 = vmatpush1.msra.mxu0 0.0
  %1690 = vmatprep.subr.mxu0 0.0
  %1691 = vmatpush1.msra.mxu0 0.0
  %1692 = vmatprep.subr.mxu0 0.0
  %1693 = vmatpush1.msra.mxu0 0.0
  %1694 = vmatprep.subr.mxu0 0.0
  %1695 = vmatpush1.msra.mxu0 0.0
  %1696 = vmatprep.subr.mxu0 0.0
  %1697 = vmatpush1.msra.mxu0 0.0
  %1698 = vmatprep.subr.mxu0 0.0
  %1699 = vmatpush1.msra.mxu0 0.0
  %1700 = vmatprep.subr.mxu0 0.0
  %1701 = vmatpush1.msra.mxu0 0.0
  %1702 = vmatprep.subr.mxu0 0.0
  %1703 = vmatpush1.msra.mxu0 0.0
  %1704 = vmatprep.subr.mxu0 0.0
  %1705 = vmatpush1.msra.mxu0 0.0
  %1706 = vmatprep.subr.mxu0 0.0
  %1707 = vmatpush1.msra.mxu0 0.0
  %1708 = vmatprep.subr.mxu0 0.0
  %1709 = vmatpush1.msra.mxu0 0.0
  %1710 = vmatprep.subr.mxu0 0.0
  %1711 = vmatpush1.msra.mxu0 0.0
  %1712 = vmatprep.subr.mxu0 0.0
  %1713 = vmatpush1.msra.mxu0 0.0
  %1714 = vmatprep.subr.mxu0 0.0
  %1715 = vmatpush1.msra.mxu0 0.0
  %1716 = vmatprep.subr.mxu0 0.0
  %1717 = vmatpush1.msra.mxu0 0.0
  %1718 = vmatprep.subr.mxu0 0.0
  %1719 = vmatpush1.msra.mxu0 0.0
  %1720 = vmatprep.subr.mxu0 0.0
  %1721 = vmatpush1.msra.mxu0 0.0
  %1722 = vmatprep.subr.mxu0 0.0
  %1723 = vmatpush1.msra.mxu0 0.0
  %1724 = vmatprep.subr.mxu0 0.0
  %1725 = vmatpush1.msra.mxu0 0.0
  %1726 = vmatprep.subr.mxu0 0.0
  %1727 = vmatpush1.msra.mxu0 0.0
  %1728 = vmatprep.subr.mxu0 0.0
  %1729 = vmatpush1.msra.mxu0 0.0
  %1730 = vmatprep.subr.mxu0 0.0
  %1731 = vmatpush1.msra.mxu0 0.0
  %1732 = vmatprep.subr.mxu0 0.0
  %1733 = vmatpush1.msra.mxu0 0.0
  %1734 = vmatprep.subr.mxu0 0.0
  %1735 = vmatpush1.msra.mxu0 0.0
  %1736 = vmatprep.mubr.f32.mxu0 0.0
  %1737 = vmatmul.mubr.f32.gmra.mrb[0].mxu0 %v1670
  %v1738 = vpop.f32.mrb[0].mxu0
  %v1739 = vadd.f32 0.0, %v1738
  %v1740 = vpop.f32.mrb[0].mxu0
  %1741 = vdwg.mxu0
  %v1750 = vrot.slane %v1228, 1
  %vm1751 = vcmask 1041409
  %v1752 = vsel %vm1751, %v1301, %v1750
  %v1753 = vrot.slane %v1374, 7
  %vm1754 = vcmask 1042434
  %v1755 = vsel %vm1754, %v1753, %v1752
  %v1756 = vrot.slane %v1447, 6
  %vm1757 = vcmask 1043459
  %v1758 = vsel %vm1757, %v1756, %v1755
  %v1759 = vrot.slane %v1520, 5
  %vm1760 = vcmask 1044484
  %v1761 = vsel %vm1760, %v1759, %v1758
  %v1762 = vrot.slane %v1593, 4
  %vm1763 = vcmask 1045509
  %v1764 = vsel %vm1763, %v1762, %v1761
  %v1765 = vrot.slane %v1666, 3
  %vm1766 = vcmask 1046534
  %v1767 = vsel %vm1766, %v1765, %v1764
  %v1768 = vrot.slane %v1739, 2
  %vm1769 = vcmask 1047559
  %v1770 = vsel %vm1769, %v1768, %v1767
  %vm1771 = vcmask 261120
  %v1772 = vsel %vm1771, %v1770, 0
  %1774 = vmatprep.subr.mxu0 0.0
  %1775 = vmatpush1.msra.mxu0 %v79
  %1776 = vmatprep.subr.mxu0 0.0
  %1777 = vmatpush1.msra.mxu0 %v80
  %1778 = vmatprep.subr.mxu0 0.0
  %1779 = vmatpush1.msra.mxu0 %v81
  %1780 = vmatprep.subr.mxu0 0.0
  %1781 = vmatpush1.msra.mxu0 %v82
  %1782 = vmatprep.subr.mxu0 0.0
  %1783 = vmatpush1.msra.mxu0 0.0
  %1784 = vmatprep.subr.mxu0 0.0
  %1785 = vmatpush1.msra.mxu0 0.0
  %1786 = vmatprep.subr.mxu0 0.0
  %1787 = vmatpush1.msra.mxu0 0.0
  %1788 = vmatprep.subr.mxu0 0.0
  %1789 = vmatpush1.msra.mxu0 0.0
  %1790 = vmatprep.subr.mxu0 0.0
  %1791 = vmatpush1.msra.mxu0 0.0
  %1792 = vmatprep.subr.mxu0 0.0
  %1793 = vmatpush1.msra.mxu0 0.0
  %1794 = vmatprep.subr.mxu0 0.0
  %1795 = vmatpush1.msra.mxu0 0.0
  %1796 = vmatprep.subr.mxu0 0.0
  %1797 = vmatpush1.msra.mxu0 0.0
  %1798 = vmatprep.subr.mxu0 0.0
  %1799 = vmatpush1.msra.mxu0 0.0
  %1800 = vmatprep.subr.mxu0 0.0
  %1801 = vmatpush1.msra.mxu0 0.0
  %1802 = vmatprep.subr.mxu0 0.0
  %1803 = vmatpush1.msra.mxu0 0.0
  %1804 = vmatprep.subr.mxu0 0.0
  %1805 = vmatpush1.msra.mxu0 0.0
  %1806 = vmatprep.subr.mxu0 0.0
  %1807 = vmatpush1.msra.mxu0 0.0
  %1808 = vmatprep.subr.mxu0 0.0
  %1809 = vmatpush1.msra.mxu0 0.0
  %1810 = vmatprep.subr.mxu0 0.0
  %1811 = vmatpush1.msra.mxu0 0.0
  %1812 = vmatprep.subr.mxu0 0.0
  %1813 = vmatpush1.msra.mxu0 0.0
  %1814 = vmatprep.subr.mxu0 0.0
  %1815 = vmatpush1.msra.mxu0 0.0
  %1816 = vmatprep.subr.mxu0 0.0
  %1817 = vmatpush1.msra.mxu0 0.0
  %1818 = vmatprep.subr.mxu0 0.0
  %1819 = vmatpush1.msra.mxu0 0.0
  %1820 = vmatprep.subr.mxu0 0.0
  %1821 = vmatpush1.msra.mxu0 0.0
  %1822 = vmatprep.subr.mxu0 0.0
  %1823 = vmatpush1.msra.mxu0 0.0
  %1824 = vmatprep.subr.mxu0 0.0
  %1825 = vmatpush1.msra.mxu0 0.0
  %1826 = vmatprep.subr.mxu0 0.0
  %1827 = vmatpush1.msra.mxu0 0.0
  %1828 = vmatprep.subr.mxu0 0.0
  %1829 = vmatpush1.msra.mxu0 0.0
  %1830 = vmatprep.subr.mxu0 0.0
  %1831 = vmatpush1.msra.mxu0 0.0
  %1832 = vmatprep.subr.mxu0 0.0
  %1833 = vmatpush1.msra.mxu0 0.0
  %1834 = vmatprep.subr.mxu0 0.0
  %1835 = vmatpush1.msra.mxu0 0.0
  %1836 = vmatprep.subr.mxu0 0.0
  %1837 = vmatpush1.msra.mxu0 0.0
  %1838 = vmatprep.mubr.f32.mxu0 0.0
  %1839 = vmatmul.mubr.f32.gmra.mrb[0].mxu0 %v1772
  %v1840 = vpop.f32.mrb[0].mxu0
  %v1841 = vadd.f32 0.0, %v1840
  %v1842 = vpop.f32.mrb[0].mxu0
  %1843 = vdwg.mxu0
  %v1844 = vrot.slane %v1301, 7
  %v1845 = vsel %vm1751, %v1844, %v1228
  %v1846 = vrot.slane %v1374, 6
  %v1847 = vsel %vm1754, %v1846, %v1845
  %v1848 = vrot.slane %v1447, 5
  %v1849 = vsel %vm1757, %v1848, %v1847
  %v1850 = vrot.slane %v1520, 4
  %v1851 = vsel %vm1760, %v1850, %v1849
  %v1852 = vrot.slane %v1593, 3
  %v1853 = vsel %vm1763, %v1852, %v1851
  %v1854 = vrot.slane %v1666, 2
  %v1855 = vsel %vm1766, %v1854, %v1853
  %v1856 = vrot.slane %v1739, 1
  %v1857 = vsel %vm1769, %v1856, %v1855
  %v1858 = vsel %vm1771, %v1857, 0
  %1860 = vmatprep.subr.mxu0 0.0
  %1861 = vmatpush1.msra.mxu0 %v75
  %1862 = vmatprep.subr.mxu0 0.0
  %1863 = vmatpush1.msra.mxu0 %v76
  %1864 = vmatprep.subr.mxu0 0.0
  %1865 = vmatpush1.msra.mxu0 %v77
  %1866 = vmatprep.subr.mxu0 0.0
  %1867 = vmatpush1.msra.mxu0 %v78
  %1868 = vmatprep.subr.mxu0 0.0
  %1869 = vmatpush1.msra.mxu0 0.0
  %1870 = vmatprep.subr.mxu0 0.0
  %1871 = vmatpush1.msra.mxu0 0.0
  %1872 = vmatprep.subr.mxu0 0.0
  %1873 = vmatpush1.msra.mxu0 0.0
  %1874 = vmatprep.subr.mxu0 0.0
  %1875 = vmatpush1.msra.mxu0 0.0
  %1876 = vmatprep.subr.mxu0 0.0
  %1877 = vmatpush1.msra.mxu0 0.0
  %1878 = vmatprep.subr.mxu0 0.0
  %1879 = vmatpush1.msra.mxu0 0.0
  %1880 = vmatprep.subr.mxu0 0.0
  %1881 = vmatpush1.msra.mxu0 0.0
  %1882 = vmatprep.subr.mxu0 0.0
  %1883 = vmatpush1.msra.mxu0 0.0
  %1884 = vmatprep.subr.mxu0 0.0
  %1885 = vmatpush1.msra.mxu0 0.0
  %1886 = vmatprep.subr.mxu0 0.0
  %1887 = vmatpush1.msra.mxu0 0.0
  %1888 = vmatprep.subr.mxu0 0.0
  %1889 = vmatpush1.msra.mxu0 0.0
  %1890 = vmatprep.subr.mxu0 0.0
  %1891 = vmatpush1.msra.mxu0 0.0
  %1892 = vmatprep.subr.mxu0 0.0
  %1893 = vmatpush1.msra.mxu0 0.0
  %1894 = vmatprep.subr.mxu0 0.0
  %1895 = vmatpush1.msra.mxu0 0.0
  %1896 = vmatprep.subr.mxu0 0.0
  %1897 = vmatpush1.msra.mxu0 0.0
  %1898 = vmatprep.subr.mxu0 0.0
  %1899 = vmatpush1.msra.mxu0 0.0
  %1900 = vmatprep.subr.mxu0 0.0
  %1901 = vmatpush1.msra.mxu0 0.0
  %1902 = vmatprep.subr.mxu0 0.0
  %1903 = vmatpush1.msra.mxu0 0.0
  %1904 = vmatprep.subr.mxu0 0.0
  %1905 = vmatpush1.msra.mxu0 0.0
  %1906 = vmatprep.subr.mxu0 0.0
  %1907 = vmatpush1.msra.mxu0 0.0
  %1908 = vmatprep.subr.mxu0 0.0
  %1909 = vmatpush1.msra.mxu0 0.0
  %1910 = vmatprep.subr.mxu0 0.0
  %1911 = vmatpush1.msra.mxu0 0.0
  %1912 = vmatprep.subr.mxu0 0.0
  %1913 = vmatpush1.msra.mxu0 0.0
  %1914 = vmatprep.subr.mxu0 0.0
  %1915 = vmatpush1.msra.mxu0 0.0
  %1916 = vmatprep.subr.mxu0 0.0
  %1917 = vmatpush1.msra.mxu0 0.0
  %1918 = vmatprep.subr.mxu0 0.0
  %1919 = vmatpush1.msra.mxu0 0.0
  %1920 = vmatprep.subr.mxu0 0.0
  %1921 = vmatpush1.msra.mxu0 0.0
  %1922 = vmatprep.subr.mxu0 0.0
  %1923 = vmatpush1.msra.mxu0 0.0
  %1924 = vmatprep.mubr.f32.mxu0 0.0
  %1925 = vmatmul.mubr.f32.gmra.mrb[0].mxu0 %v1858
  %v1926 = vpop.f32.mrb[0].mxu0
  %v1927 = vadd.f32 %v1841, %v1926
  %v1928 = vpop.f32.mrb[0].mxu0
  %1929 = vdwg.mxu0
  %v1930 = vadd.f32 %v1927, %v83
  %vm1931 = vcmask 31744
  %1932 = vst.msk [vmem:[%s9] sm:$0xff] %vm1931, %v1930
  // Predicated region
  $region38: #{tpu_custom_call.1} parent=0 // pred_check
    _
  $region39: #{tpu_custom_call.1} parent=0 // pred_check_branch
    %1934 = sbr.rel (0) target = $region41
  $region40: #{tpu_custom_call.1} parent=0 // pred_region
    _
  $region41: #{tpu_custom_call.1} parent=0 // pred_fallthru
    _
  // Predicated region
  $region42: #{tpu_custom_call.1} parent=0 // pred_check
    _
  $region43: #{tpu_custom_call.1} parent=0 // pred_check_branch
    %1936 = sbr.rel (0) target = $region45
  $region44: #{tpu_custom_call.1} parent=0 // pred_region
    _
  $region45: #{tpu_custom_call.1} parent=0 // pred_fallthru
    _

</llo_original>
